<compile_context>
chip_gen: v7x
topology: tpu7x:2x2x1
jax: 0.10.0
libtpu: 0.0.40
codegen_flags: <defaults>
</compile_context>

<pallas_src>
import functools

import jax
import jax.numpy as jnp
import numpy as np
from jax.experimental import pallas as pl
from jax.experimental.pallas import tpu as pltpu

_G = 8  # sublane-aligned offset of the live rows inside the shift scratch


# ----------------------------------------------------------------------------
# fused decoder kernel (nb batch items stacked on sublanes per grid step)
# ----------------------------------------------------------------------------
def _decoder_fused_kernel(x_ref, w1_ref, b1_ref, wr1_ref, wr2_ref,
                          wd1_ref, bd1_ref, wd2_ref, bd2_ref, hd_ref, bh_ref,
                          o_ref, scr_ref, *, L, S):
    M = x_ref.shape[0]                 # = nb * S rows
    H = b1_ref.shape[1]
    H2 = hd_ref.shape[0] // 5

    # Per-item row masks.  Item k occupies rows [k*S, k*S + L); rows
    # [k*S + L, (k+1)*S) are guard rows whose content is never trusted.
    ridx = jax.lax.broadcasted_iota(jnp.int32, (M, 1), 0)
    rmod = ridx % S
    first = rmod == 0                  # first row of each item
    last_valid = rmod == (L - 1)       # last *valid* row of each item
    guard = rmod >= L                  # guard rows

    def _dot(a, b):
        return jnp.dot(a, b, preferred_element_type=jnp.float32)

    # +/-1 row shifts: store once into the (uninitialised) scratch, read the
    # two off-by-one windows; cross-item / out-of-range rows are masked with a
    # select, so the scratch never needs zero-filling.
    # TODO(synk): replace with pltpu.roll(x, +/-1, axis=0) + the same masks to
    # drop the scratch store + misaligned reloads entirely.
    def shift_down(a):                 # a[i-1], zero at item-first rows
        C = a.shape[-1]
        scr_ref[_G:_G + M, :C] = a
        return jnp.where(first, 0.0, scr_ref[_G - 1:_G - 1 + M, :C])

    def shift_up(a):                   # a[i+1], zero at item-last rows
        C = a.shape[-1]
        scr_ref[_G:_G + M, :C] = a
        return jnp.where(last_valid, 0.0, scr_ref[_G + 1:_G + 1 + M, :C])

    def cat3(a):                       # [a[i-1] | a[i] | a[i+1]]  (one store)
        C = a.shape[-1]
        scr_ref[_G:_G + M, :C] = a
        prv = jnp.where(first, 0.0, scr_ref[_G - 1:_G - 1 + M, :C])
        nxt = jnp.where(last_valid, 0.0, scr_ref[_G + 1:_G + 1 + M, :C])
        return jnp.concatenate([prv, a, nxt], axis=-1)

    # ---- conv_1: Conv1d(Cin -> H, k=3, s=1, p=1) + bias (one fused dot) ----
    h = _dot(cat3(x_ref[...]), w1_ref[...]) + b1_ref[...]

    # ---- ResidualStack: h += Conv1x1(tanh(Conv3(tanh(h)))); final tanh -----
    for i in range(wr1_ref.shape[0]):
        z = jnp.tanh(_dot(cat3(jnp.tanh(h)), wr1_ref[i]))
        h = h + _dot(z, wr2_ref[i])
    h = jnp.tanh(h)                                                  # (M, H)

    # ---- ConvTranspose1d #1 (k=4, s=2, p=1, H -> H) + tanh, lane-packed ----
    # eo = [even | odd] with out1[2m] = even[m], out1[2m+1] = odd[m].
    eo = jnp.tanh(_dot(cat3(h), wd1_ref[...]) + bd1_ref[...])        # (M, 2H)

    # ---- ConvTranspose1d #2 (k=4, s=2, p=1, H -> H/2) + tanh, packed -------
    # ph = [p0|p1|p2|p3] with out2[4j + r] = p_r[j].
    d2in = jnp.concatenate(
        [eo, shift_down(eo[:, H:]), shift_up(eo[:, :H])], axis=-1)   # (M, 4H)
    ph = jnp.tanh(_dot(d2in, wd2_ref[...]) + bd2_ref[...])           # (M, 4*H2)
    # Zero guard rows so the head output at row L of each item only sees the
    # p3[L-1] contribution (== the trailing output sample out[8L]).
    ph = jnp.where(guard, 0.0, ph)

    # ---- ConvTranspose1d #3 head (k=3, s=2, p=0, H/2 -> 1) + exp -----------
    # 8 lane-packed output phases per row: out[8j + r] = rows[j, r]; the
    # per-item trailing sample out[8L] lands in column 0 of the guard row L.
    hin = jnp.concatenate([ph, shift_down(ph[:, 3 * H2:])], axis=-1)  # (M, 5*H2)
    o_ref[...] = jnp.exp(_dot(hin, hd_ref[...]) + bh_ref[...])


# ----------------------------------------------------------------------------
# pallas_call wrapper
# ----------------------------------------------------------------------------
_WKEYS = ('w1', 'b1', 'wr1', 'wr2', 'wd1', 'bd1', 'wd2', 'bd2', 'hd', 'bh')


def _full_spec(shape):
    nd = len(shape)
    return pl.BlockSpec(tuple(shape), lambda g, _n=nd: (0,) * _n)


def _decoder_pallas(xp, p, *, item_len, stride):
    gsteps, M, cin = xp.shape
    H = p['b1'].shape[1]
    scr_w = max(cin, H)
    kern = functools.partial(_decoder_fused_kernel, L=item_len, S=stride)
    return pl.pallas_call(
        kern,
        out_shape=jax.ShapeDtypeStruct((gsteps, M, 8), jnp.float32),
        grid=(gsteps,),
        in_specs=[pl.BlockSpec((None, M, cin), lambda g: (g, 0, 0))]
                 + [_full_spec(p[k].shape) for k in _WKEYS],
        out_specs=pl.BlockSpec((None, M, 8), lambda g: (g, 0, 0)),
        scratch_shapes=[pltpu.VMEM((M + 2 * _G, scr_w), jnp.float32)],
        compiler_params=pltpu.CompilerParams(
            dimension_semantics=("parallel",)),
        # TODO(synk): for very large L, add an inner "arbitrary" grid axis over
        # L-tiles with halo rows and raise vmem_limit_bytes (v7x has only
        # 64 MiB VMEM per TensorCore).
    )(xp, *[p[k] for k in _WKEYS])


def _pick_items_per_step(batch, stride, target_rows=1024):
    nb = 1
    for cand in range(1, batch + 1):
        if batch % cand == 0 and cand * stride <= max(stride, target_rows):
            nb = cand
    return nb


@jax.jit
def decoder_forward(x_ncl, p):
    """Decoder forward.  x_ncl: (B, in_channels, L) -> (B, 1, 8*L + 1)."""
    B, cin, L = x_ncl.shape
    S = ((L + 1 + 7) // 8) * 8            # per-item row stride (>= L+1, 8-aligned)
    nb = _pick_items_per_step(B, S)       # items stacked per grid step
    # TODO(synk): fold this NCL->rows-major prep (transpose + guard-row pad)
    # into the kernel to save one HBM pass over the (small) input.
    x = jnp.transpose(x_ncl, (0, 2, 1)).astype(jnp.float32)          # (B, L, Cin)
    x = jnp.pad(x, ((0, 0), (0, S - L), (0, 0)))                     # (B, S, Cin)
    xp = x.reshape(B // nb, nb * S, cin)
    phases = _decoder_pallas(xp, p, item_len=L, stride=S)            # (B//nb, nb*S, 8)
    flat = phases.reshape(B, S * 8)[:, :8 * L + 1]
    return flat[:, None, :]                                          # (B, 1, 8L+1)


# ----------------------------------------------------------------------------
# deterministic parameter init (PyTorch weight layouts) + kernel-layout packing
# ----------------------------------------------------------------------------
def init_torch_params(key, in_ch, H, R, Rh):
    ks = jax.random.split(key, 10)
    s = 0.1
    n = lambda k, shape: s * jax.random.normal(k, shape, jnp.float32)
    return {
        'conv1_w': n(ks[0], (H, in_ch, 3)),        # Conv1d weight (O, I, K)
        'conv1_b': n(ks[1], (H,)),
        'res_w1': n(ks[2], (R, Rh, H, 3)),         # per-layer Conv1d k=3, no bias
        'res_w2': n(ks[3], (R, H, Rh, 1)),         # per-layer Conv1d k=1, no bias
        'ct1_w': n(ks[4], (H, H, 4)),              # ConvTranspose1d weight (I, O, K)
        'ct1_b': n(ks[5], (H,)),
        'ct2_w': n(ks[6], (H, H // 2, 4)),
        'ct2_b': n(ks[7], (H // 2,)),
        'ct3_w': n(ks[8], (H // 2, 1, 3)),
        'ct3_b': n(ks[9], (1,)),
    }


def _head_matrices(ct3_w, ct3_b):
    # Fold the cout=1 head (k=3, s=2, p=0) into five (H/2, 8) matrices so the
    # kernel emits 8 lane-packed output phases per row.
    w = ct3_w[:, 0, :]                           # (H2, 3): columns w0, w1, w2
    H2 = w.shape[0]
    z = jnp.zeros((H2, 8), jnp.float32)
    m0 = z.at[:, 0].set(w[:, 0]).at[:, 1].set(w[:, 1]).at[:, 2].set(w[:, 2])
    m1 = z.at[:, 2].set(w[:, 0]).at[:, 3].set(w[:, 1]).at[:, 4].set(w[:, 2])
    m2 = z.at[:, 4].set(w[:, 0]).at[:, 5].set(w[:, 1]).at[:, 6].set(w[:, 2])
    m3 = z.at[:, 6].set(w[:, 0]).at[:, 7].set(w[:, 1])
    mp = z.at[:, 0].set(w[:, 2])                 # p3[j-1] * w2 -> column 0
    hm = jnp.stack([m0, m1, m2, m3, mp], axis=0)
    bh = jnp.full((1, 8), ct3_b[0], jnp.float32)
    return hm, bh


def to_kernel_params(tw):
    H, cin, _ = tw['conv1_w'].shape
    R, Rh = tw['res_w1'].shape[0], tw['res_w1'].shape[1]
    H2 = tw['ct2_w'].shape[1]

    # conv_1: fused over taps, input order [x_prev | x | x_next].
    w1 = jnp.transpose(tw['conv1_w'], (2, 1, 0)).reshape(3 * cin, H)
    b1 = tw['conv1_b'][None, :]

    # Residual conv3 (fused over taps) and conv1x1.
    wr1 = jnp.transpose(tw['res_w1'], (0, 3, 2, 1)).reshape(R, 3 * H, Rh)
    wr2 = jnp.transpose(tw['res_w2'][..., 0], (0, 2, 1))               # (R, Rh, H)

    # Deconv1 (k=4,s=2,p=1): input [h_prev | h | h_next] -> output [even | odd].
    wt1 = jnp.transpose(tw['ct1_w'], (2, 0, 1))                        # (4, H, H)
    z = jnp.zeros((H, H), jnp.float32)
    wd1 = jnp.concatenate([
        jnp.concatenate([wt1[3], z], axis=1),            # h_prev rows
        jnp.concatenate([wt1[1], wt1[2]], axis=1),       # h rows
        jnp.concatenate([z, wt1[0]], axis=1),            # h_next rows
    ], axis=0)                                           # (3H, 2H)
    bd1 = jnp.concatenate([tw['ct1_b'], tw['ct1_b']])[None, :]

    # Deconv2 (k=4,s=2,p=1): input [even | odd | odd_prev | even_next]
    # -> output [p0 | p1 | p2 | p3].
    wt2 = jnp.transpose(tw['ct2_w'], (2, 0, 1))                        # (4, H, H2)
    z2 = jnp.zeros((H, H2), jnp.float32)
    wd2 = jnp.concatenate([
        jnp.concatenate([wt2[1], wt2[2], wt2[3], z2], axis=1),   # even rows
        jnp.concatenate([z2, wt2[0], wt2[1], wt2[2]], axis=1),   # odd rows
        jnp.concatenate([wt2[3], z2, z2, z2], axis=1),           # odd_prev rows
        jnp.concatenate([z2, z2, z2, wt2[0]], axis=1),           # even_next rows
    ], axis=0)                                           # (4H, 4*H2)
    bd2 = jnp.tile(tw['ct2_b'], 4)[None, :]

    # Head (k=3,s=2,p=0, cout=1): input [p0|p1|p2|p3|p3_prev] -> 8 phases.
    hm, bh = _head_matrices(tw['ct3_w'], tw['ct3_b'])
    hd = hm.reshape(5 * H2, 8)

    return {'w1': w1, 'b1': b1, 'wr1': wr1, 'wr2': wr2,
            'wd1': wd1, 'bd1': bd1, 'wd2': wd2, 'bd2': bd2,
            'hd': hd, 'bh': bh}


# ----------------------------------------------------------------------------
# pure-JAX reference (mirrors the PyTorch module)
# ----------------------------------------------------------------------------
def torch_ref_forward(x_ncl, tw):
    def conv1d(x, w, b, padding):
        y = jax.lax.conv_general_dilated(
            x, w, (1,), [(padding, padding)],
            dimension_numbers=('NCH', 'OIH', 'NCH'))
        return y if b is None else y + b[None, :, None]

    def conv_t1d(x, w_iok, b, stride, padding):
        K = w_iok.shape[2]
        w_oik = jnp.transpose(jnp.flip(w_iok, axis=2), (1, 0, 2))
        y = jax.lax.conv_general_dilated(
            x, w_oik, (1,), [(K - 1 - padding, K - 1 - padding)],
            lhs_dilation=(stride,), dimension_numbers=('NCH', 'OIH', 'NCH'))
        return y + b[None, :, None]

    h = conv1d(x_ncl, tw['conv1_w'], tw['conv1_b'], padding=1)
    for i in range(tw['res_w1'].shape[0]):
        t = jnp.tanh(h)
        zz = jnp.tanh(conv1d(t, tw['res_w1'][i], None, padding=1))
        h = h + conv1d(zz, tw['res_w2'][i], None, padding=0)
    h = jnp.tanh(h)
    h = jnp.tanh(conv_t1d(h, tw['ct1_w'], tw['ct1_b'], 2, 1))
    h = jnp.tanh(conv_t1d(h, tw['ct2_w'], tw['ct2_b'], 2, 1))
    return jnp.exp(conv_t1d(h, tw['ct3_w'], tw['ct3_b'], 2, 0))


# ----------------------------------------------------------------------------
if __name__ == "__main__":
    B, in_channels, L = 2, 8, 16
    num_hiddens, num_residual_layers, num_residual_hiddens = 32, 2, 16

    key = jax.random.PRNGKey(0)
    k_x, k_p = jax.random.split(key)
    x = jax.random.normal(k_x, (B, in_channels, L), jnp.float32)   # NCL

    tw = init_torch_params(k_p, in_channels, num_hiddens,
                           num_residual_layers, num_residual_hiddens)
    p = to_kernel_params(tw)

    out = jax.block_until_ready(decoder_forward(x, p))
    assert out.shape == (B, 1, 8 * L + 1), out.shape

    ref = jax.block_until_ready(torch_ref_forward(x, tw))
    np.testing.assert_allclose(np.asarray(out), np.asarray(ref),
                               rtol=5e-3, atol=5e-3)
    print("KERNEL_OK")
</pallas_src>

<mosaic_0001>
module attributes {stable_mosaic.version = 11 : i64} {
  func.func @_decoder_fused_kernel(%arg0: i32, %arg1: memref<1x48x8xf32, #tpu.memory_space<vmem>>, %arg2: memref<24x32xf32, #tpu.memory_space<vmem>>, %arg3: memref<1x32xf32, #tpu.memory_space<vmem>>, %arg4: memref<2x96x16xf32, #tpu.memory_space<vmem>>, %arg5: memref<2x16x32xf32, #tpu.memory_space<vmem>>, %arg6: memref<96x64xf32, #tpu.memory_space<vmem>>, %arg7: memref<1x64xf32, #tpu.memory_space<vmem>>, %arg8: memref<128x64xf32, #tpu.memory_space<vmem>>, %arg9: memref<1x64xf32, #tpu.memory_space<vmem>>, %arg10: memref<80x8xf32, #tpu.memory_space<vmem>>, %arg11: memref<1x8xf32, #tpu.memory_space<vmem>>, %arg12: memref<1x48x8xf32, #tpu.memory_space<vmem>>, %arg13: memref<64x32xf32, #tpu.memory_space<vmem>>) attributes {dimension_semantics = [#tpu.dimension_semantics<parallel>], iteration_bounds = array<i64: 1>, scalar_prefetch = 0 : i64, scratch_operands = 1 : i64, tpu.core_type = #tpu.core_type<tc>, window_params = [{transform_indices = @transform_0, window_bounds = array<i64: 1, 48, 8>}, {pipeline_mode = #tpu.pipeline_mode<synchronous>, transform_indices = @transform_1, window_bounds = array<i64: 24, 32>}, {pipeline_mode = #tpu.pipeline_mode<synchronous>, transform_indices = @transform_2, window_bounds = array<i64: 1, 32>}, {pipeline_mode = #tpu.pipeline_mode<synchronous>, transform_indices = @transform_3, window_bounds = array<i64: 2, 96, 16>}, {pipeline_mode = #tpu.pipeline_mode<synchronous>, transform_indices = @transform_4, window_bounds = array<i64: 2, 16, 32>}, {pipeline_mode = #tpu.pipeline_mode<synchronous>, transform_indices = @transform_5, window_bounds = array<i64: 96, 64>}, {pipeline_mode = #tpu.pipeline_mode<synchronous>, transform_indices = @transform_6, window_bounds = array<i64: 1, 64>}, {pipeline_mode = #tpu.pipeline_mode<synchronous>, transform_indices = @transform_7, window_bounds = array<i64: 128, 64>}, {pipeline_mode = #tpu.pipeline_mode<synchronous>, transform_indices = @transform_8, window_bounds = array<i64: 1, 64>}, {pipeline_mode = #tpu.pipeline_mode<synchronous>, transform_indices = @transform_9, window_bounds = array<i64: 80, 8>}, {pipeline_mode = #tpu.pipeline_mode<synchronous>, transform_indices = @transform_10, window_bounds = array<i64: 1, 8>}, {transform_indices = @transform_11, window_bounds = array<i64: 1, 48, 8>}]} {
    %0 = tpu.iota {dimensions = array<i32: 0>} : vector<48x1xi32>
    %c24_i32 = arith.constant 24 : i32
    %c0_i32 = arith.constant 0 : i32
    %1 = arith.cmpi eq, %c24_i32, %c0_i32 : i32
    %c1_i32 = arith.constant 1 : i32
    %2 = arith.select %1, %c1_i32, %c24_i32 : i32
    %3 = vector.broadcast %2 : i32 to vector<48x1xi32>
    %4 = arith.remsi %0, %3 : vector<48x1xi32>
    %c0_i32_0 = arith.constant 0 : i32
    %5 = vector.broadcast %c0_i32_0 : i32 to vector<48x1xi32>
    %6 = arith.cmpi ne, %4, %5 : vector<48x1xi32>
    %c0_i32_1 = arith.constant 0 : i32
    %7 = vector.broadcast %c0_i32_1 : i32 to vector<48x1xi32>
    %8 = arith.cmpi slt, %4, %7 : vector<48x1xi32>
    %c0_i32_2 = arith.constant 0 : i32
    %9 = arith.cmpi slt, %2, %c0_i32_2 : i32
    %10 = vector.broadcast %9 : i1 to vector<48x1xi1>
    %11 = vector.broadcast %10 : vector<48x1xi1> to vector<48x1xi1>
    %12 = arith.xori %8, %11 : vector<48x1xi1>
    %13 = arith.andi %12, %6 : vector<48x1xi1>
    %14 = vector.broadcast %2 : i32 to vector<48x1xi32>
    %15 = arith.addi %4, %14 : vector<48x1xi32>
    %16 = arith.select %13, %15, %4 : vector<48x1xi1>, vector<48x1xi32>
    %c0_i32_3 = arith.constant 0 : i32
    %17 = vector.broadcast %c0_i32_3 : i32 to vector<48x1xi32>
    %18 = arith.cmpi eq, %16, %17 : vector<48x1xi32>
    %c15_i32 = arith.constant 15 : i32
    %19 = vector.broadcast %c15_i32 : i32 to vector<48x1xi32>
    %20 = arith.cmpi eq, %16, %19 : vector<48x1xi32>
    %c16_i32 = arith.constant 16 : i32
    %21 = vector.broadcast %c16_i32 : i32 to vector<48x1xi32>
    %22 = arith.cmpi sge, %16, %21 : vector<48x1xi32>
    %c0 = arith.constant 0 : index
    %c0_4 = arith.constant 0 : index
    %c0_5 = arith.constant 0 : index
    %23 = vector.load %arg1[%c0, %c0_4, %c0_5] : memref<1x48x8xf32, #tpu.memory_space<vmem>>, vector<1x48x8xf32>
    %24 = vector.shape_cast %23 : vector<1x48x8xf32> to vector<48x8xf32>
    %c8 = arith.constant 8 : index
    %c0_6 = arith.constant 0 : index
    %25 = vector.load %arg13[%c8, %c0_6] : memref<64x32xf32, #tpu.memory_space<vmem>>, vector<48x8xf32>
    tpu.vector_store %arg13[%c8, %c0_6], %24 {strides = array<i32>} : memref<64x32xf32, #tpu.memory_space<vmem>>, vector<48x8xf32>,
    %c7 = arith.constant 7 : index
    %c0_7 = arith.constant 0 : index
    %26 = vector.load %arg13[%c7, %c0_7] : memref<64x32xf32, #tpu.memory_space<vmem>>, vector<48x8xf32>
    %cst = arith.constant 0.000000e+00 : f32
    %27 = vector.shape_cast %18 : vector<48x1xi1> to vector<48x1xi1>
    %28 = vector.broadcast %27 : vector<48x1xi1> to vector<48x8xi1>
    %29 = vector.broadcast %cst : f32 to vector<48x8xf32>
    %30 = arith.select %28, %29, %26 : vector<48x8xi1>, vector<48x8xf32>
    %c9 = arith.constant 9 : index
    %c0_8 = arith.constant 0 : index
    %31 = vector.load %arg13[%c9, %c0_8] : memref<64x32xf32, #tpu.memory_space<vmem>>, vector<48x8xf32>
    %cst_9 = arith.constant 0.000000e+00 : f32
    %32 = vector.shape_cast %20 : vector<48x1xi1> to vector<48x1xi1>
    %33 = vector.broadcast %32 : vector<48x1xi1> to vector<48x8xi1>
    %34 = vector.broadcast %cst_9 : f32 to vector<48x8xf32>
    %35 = arith.select %33, %34, %31 : vector<48x8xi1>, vector<48x8xf32>
    %36 = tpu.concatenate %30, %24, %35 in 1 : vector<48x8xf32>, vector<48x8xf32>, vector<48x8xf32> -> vector<48x24xf32>
    %c0_10 = arith.constant 0 : index
    %c0_11 = arith.constant 0 : index
    %37 = vector.load %arg2[%c0_10, %c0_11] : memref<24x32xf32, #tpu.memory_space<vmem>>, vector<24x32xf32>
    %cst_12 = arith.constant dense<0.000000e+00> : vector<48x32xf32>
    %38 = tpu.matmul %36, %37, %cst_12 {dimension_numbers = #tpu.dot_dimension_numbers<[1], [0], [0], [1], [0, 0, 1, 1], [], []>} : vector<48x24xf32>, vector<24x32xf32>, vector<48x32xf32> -> vector<48x32xf32>
    %c0_13 = arith.constant 0 : index
    %c0_14 = arith.constant 0 : index
    %39 = vector.load %arg3[%c0_13, %c0_14] : memref<1x32xf32, #tpu.memory_space<vmem>>, vector<1x32xf32>
    %40 = vector.broadcast %39 : vector<1x32xf32> to vector<48x32xf32>
    %41 = arith.addf %38, %40 : vector<48x32xf32>
    %42 = math.tanh %41 : vector<48x32xf32>
    %c8_15 = arith.constant 8 : index
    %c0_16 = arith.constant 0 : index
    %43 = vector.load %arg13[%c8_15, %c0_16] : memref<64x32xf32, #tpu.memory_space<vmem>>, vector<48x32xf32>
    tpu.vector_store %arg13[%c8_15, %c0_16], %42 {strides = array<i32>} : memref<64x32xf32, #tpu.memory_space<vmem>>, vector<48x32xf32>,
    %c7_17 = arith.constant 7 : index
    %c0_18 = arith.constant 0 : index
    %44 = vector.load %arg13[%c7_17, %c0_18] : memref<64x32xf32, #tpu.memory_space<vmem>>, vector<48x32xf32>
    %cst_19 = arith.constant 0.000000e+00 : f32
    %45 = vector.shape_cast %18 : vector<48x1xi1> to vector<48x1xi1>
    %46 = vector.broadcast %45 : vector<48x1xi1> to vector<48x32xi1>
    %47 = vector.broadcast %cst_19 : f32 to vector<48x32xf32>
    %48 = arith.select %46, %47, %44 : vector<48x32xi1>, vector<48x32xf32>
    %c9_20 = arith.constant 9 : index
    %c0_21 = arith.constant 0 : index
    %49 = vector.load %arg13[%c9_20, %c0_21] : memref<64x32xf32, #tpu.memory_space<vmem>>, vector<48x32xf32>
    %cst_22 = arith.constant 0.000000e+00 : f32
    %50 = vector.shape_cast %20 : vector<48x1xi1> to vector<48x1xi1>
    %51 = vector.broadcast %50 : vector<48x1xi1> to vector<48x32xi1>
    %52 = vector.broadcast %cst_22 : f32 to vector<48x32xf32>
    %53 = arith.select %51, %52, %49 : vector<48x32xi1>, vector<48x32xf32>
    %54 = tpu.concatenate %48, %42, %53 in 1 : vector<48x32xf32>, vector<48x32xf32>, vector<48x32xf32> -> vector<48x96xf32>
    %c0_23 = arith.constant 0 : index
    %c0_24 = arith.constant 0 : index
    %c0_25 = arith.constant 0 : index
    %55 = vector.load %arg4[%c0_23, %c0_24, %c0_25] : memref<2x96x16xf32, #tpu.memory_space<vmem>>, vector<1x96x16xf32>
    %56 = vector.shape_cast %55 : vector<1x96x16xf32> to vector<96x16xf32>
    %cst_26 = arith.constant dense<0.000000e+00> : vector<48x16xf32>
    %57 = tpu.matmul %54, %56, %cst_26 {dimension_numbers = #tpu.dot_dimension_numbers<[1], [0], [0], [1], [0, 0, 1, 1], [], []>} : vector<48x96xf32>, vector<96x16xf32>, vector<48x16xf32> -> vector<48x16xf32>
    %58 = math.tanh %57 : vector<48x16xf32>
    %c0_27 = arith.constant 0 : index
    %c0_28 = arith.constant 0 : index
    %c0_29 = arith.constant 0 : index
    %59 = vector.load %arg5[%c0_27, %c0_28, %c0_29] : memref<2x16x32xf32, #tpu.memory_space<vmem>>, vector<1x16x32xf32>
    %60 = vector.shape_cast %59 : vector<1x16x32xf32> to vector<16x32xf32>
    %cst_30 = arith.constant dense<0.000000e+00> : vector<48x32xf32>
    %61 = tpu.matmul %58, %60, %cst_30 {dimension_numbers = #tpu.dot_dimension_numbers<[1], [0], [0], [1], [0, 0, 1, 1], [], []>} : vector<48x16xf32>, vector<16x32xf32>, vector<48x32xf32> -> vector<48x32xf32>
    %62 = arith.addf %41, %61 : vector<48x32xf32>
    %63 = math.tanh %62 : vector<48x32xf32>
    %c8_31 = arith.constant 8 : index
    %c0_32 = arith.constant 0 : index
    %64 = vector.load %arg13[%c8_31, %c0_32] : memref<64x32xf32, #tpu.memory_space<vmem>>, vector<48x32xf32>
    tpu.vector_store %arg13[%c8_31, %c0_32], %63 {strides = array<i32>} : memref<64x32xf32, #tpu.memory_space<vmem>>, vector<48x32xf32>,
    %c7_33 = arith.constant 7 : index
    %c0_34 = arith.constant 0 : index
    %65 = vector.load %arg13[%c7_33, %c0_34] : memref<64x32xf32, #tpu.memory_space<vmem>>, vector<48x32xf32>
    %cst_35 = arith.constant 0.000000e+00 : f32
    %66 = vector.shape_cast %18 : vector<48x1xi1> to vector<48x1xi1>
    %67 = vector.broadcast %66 : vector<48x1xi1> to vector<48x32xi1>
    %68 = vector.broadcast %cst_35 : f32 to vector<48x32xf32>
    %69 = arith.select %67, %68, %65 : vector<48x32xi1>, vector<48x32xf32>
    %c9_36 = arith.constant 9 : index
    %c0_37 = arith.constant 0 : index
    %70 = vector.load %arg13[%c9_36, %c0_37] : memref<64x32xf32, #tpu.memory_space<vmem>>, vector<48x32xf32>
    %cst_38 = arith.constant 0.000000e+00 : f32
    %71 = vector.shape_cast %20 : vector<48x1xi1> to vector<48x1xi1>
    %72 = vector.broadcast %71 : vector<48x1xi1> to vector<48x32xi1>
    %73 = vector.broadcast %cst_38 : f32 to vector<48x32xf32>
    %74 = arith.select %72, %73, %70 : vector<48x32xi1>, vector<48x32xf32>
    %75 = tpu.concatenate %69, %63, %74 in 1 : vector<48x32xf32>, vector<48x32xf32>, vector<48x32xf32> -> vector<48x96xf32>
    %c1 = arith.constant 1 : index
    %c0_39 = arith.constant 0 : index
    %c0_40 = arith.constant 0 : index
    %76 = vector.load %arg4[%c1, %c0_39, %c0_40] : memref<2x96x16xf32, #tpu.memory_space<vmem>>, vector<1x96x16xf32>
    %77 = vector.shape_cast %76 : vector<1x96x16xf32> to vector<96x16xf32>
    %cst_41 = arith.constant dense<0.000000e+00> : vector<48x16xf32>
    %78 = tpu.matmul %75, %77, %cst_41 {dimension_numbers = #tpu.dot_dimension_numbers<[1], [0], [0], [1], [0, 0, 1, 1], [], []>} : vector<48x96xf32>, vector<96x16xf32>, vector<48x16xf32> -> vector<48x16xf32>
    %79 = math.tanh %78 : vector<48x16xf32>
    %c1_42 = arith.constant 1 : index
    %c0_43 = arith.constant 0 : index
    %c0_44 = arith.constant 0 : index
    %80 = vector.load %arg5[%c1_42, %c0_43, %c0_44] : memref<2x16x32xf32, #tpu.memory_space<vmem>>, vector<1x16x32xf32>
    %81 = vector.shape_cast %80 : vector<1x16x32xf32> to vector<16x32xf32>
    %cst_45 = arith.constant dense<0.000000e+00> : vector<48x32xf32>
    %82 = tpu.matmul %79, %81, %cst_45 {dimension_numbers = #tpu.dot_dimension_numbers<[1], [0], [0], [1], [0, 0, 1, 1], [], []>} : vector<48x16xf32>, vector<16x32xf32>, vector<48x32xf32> -> vector<48x32xf32>
    %83 = arith.addf %62, %82 : vector<48x32xf32>
    %84 = math.tanh %83 : vector<48x32xf32>
    %c8_46 = arith.constant 8 : index
    %c0_47 = arith.constant 0 : index
    %85 = vector.load %arg13[%c8_46, %c0_47] : memref<64x32xf32, #tpu.memory_space<vmem>>, vector<48x32xf32>
    tpu.vector_store %arg13[%c8_46, %c0_47], %84 {strides = array<i32>} : memref<64x32xf32, #tpu.memory_space<vmem>>, vector<48x32xf32>,
    %c7_48 = arith.constant 7 : index
    %c0_49 = arith.constant 0 : index
    %86 = vector.load %arg13[%c7_48, %c0_49] : memref<64x32xf32, #tpu.memory_space<vmem>>, vector<48x32xf32>
    %cst_50 = arith.constant 0.000000e+00 : f32
    %87 = vector.shape_cast %18 : vector<48x1xi1> to vector<48x1xi1>
    %88 = vector.broadcast %87 : vector<48x1xi1> to vector<48x32xi1>
    %89 = vector.broadcast %cst_50 : f32 to vector<48x32xf32>
    %90 = arith.select %88, %89, %86 : vector<48x32xi1>, vector<48x32xf32>
    %c9_51 = arith.constant 9 : index
    %c0_52 = arith.constant 0 : index
    %91 = vector.load %arg13[%c9_51, %c0_52] : memref<64x32xf32, #tpu.memory_space<vmem>>, vector<48x32xf32>
    %cst_53 = arith.constant 0.000000e+00 : f32
    %92 = vector.shape_cast %20 : vector<48x1xi1> to vector<48x1xi1>
    %93 = vector.broadcast %92 : vector<48x1xi1> to vector<48x32xi1>
    %94 = vector.broadcast %cst_53 : f32 to vector<48x32xf32>
    %95 = arith.select %93, %94, %91 : vector<48x32xi1>, vector<48x32xf32>
    %96 = tpu.concatenate %90, %84, %95 in 1 : vector<48x32xf32>, vector<48x32xf32>, vector<48x32xf32> -> vector<48x96xf32>
    %c0_54 = arith.constant 0 : index
    %c0_55 = arith.constant 0 : index
    %97 = vector.load %arg6[%c0_54, %c0_55] : memref<96x64xf32, #tpu.memory_space<vmem>>, vector<96x64xf32>
    %cst_56 = arith.constant dense<0.000000e+00> : vector<48x64xf32>
    %98 = tpu.matmul %96, %97, %cst_56 {dimension_numbers = #tpu.dot_dimension_numbers<[1], [0], [0], [1], [0, 0, 1, 1], [], []>} : vector<48x96xf32>, vector<96x64xf32>, vector<48x64xf32> -> vector<48x64xf32>
    %c0_57 = arith.constant 0 : index
    %c0_58 = arith.constant 0 : index
    %99 = vector.load %arg7[%c0_57, %c0_58] : memref<1x64xf32, #tpu.memory_space<vmem>>, vector<1x64xf32>
    %100 = vector.broadcast %99 : vector<1x64xf32> to vector<48x64xf32>
    %101 = arith.addf %98, %100 : vector<48x64xf32>
    %102 = math.tanh %101 : vector<48x64xf32>
    %103 = vector.extract_strided_slice %102 {offsets = [0, 32], sizes = [48, 32], strides = [1, 1]} : vector<48x64xf32> to vector<48x32xf32>
    %c8_59 = arith.constant 8 : index
    %c0_60 = arith.constant 0 : index
    %104 = vector.load %arg13[%c8_59, %c0_60] : memref<64x32xf32, #tpu.memory_space<vmem>>, vector<48x32xf32>
    tpu.vector_store %arg13[%c8_59, %c0_60], %103 {strides = array<i32>} : memref<64x32xf32, #tpu.memory_space<vmem>>, vector<48x32xf32>,
    %c7_61 = arith.constant 7 : index
    %c0_62 = arith.constant 0 : index
    %105 = vector.load %arg13[%c7_61, %c0_62] : memref<64x32xf32, #tpu.memory_space<vmem>>, vector<48x32xf32>
    %cst_63 = arith.constant 0.000000e+00 : f32
    %106 = vector.shape_cast %18 : vector<48x1xi1> to vector<48x1xi1>
    %107 = vector.broadcast %106 : vector<48x1xi1> to vector<48x32xi1>
    %108 = vector.broadcast %cst_63 : f32 to vector<48x32xf32>
    %109 = arith.select %107, %108, %105 : vector<48x32xi1>, vector<48x32xf32>
    %110 = vector.extract_strided_slice %102 {offsets = [0, 0], sizes = [48, 32], strides = [1, 1]} : vector<48x64xf32> to vector<48x32xf32>
    %c8_64 = arith.constant 8 : index
    %c0_65 = arith.constant 0 : index
    %111 = vector.load %arg13[%c8_64, %c0_65] : memref<64x32xf32, #tpu.memory_space<vmem>>, vector<48x32xf32>
    tpu.vector_store %arg13[%c8_64, %c0_65], %110 {strides = array<i32>} : memref<64x32xf32, #tpu.memory_space<vmem>>, vector<48x32xf32>,
    %c9_66 = arith.constant 9 : index
    %c0_67 = arith.constant 0 : index
    %112 = vector.load %arg13[%c9_66, %c0_67] : memref<64x32xf32, #tpu.memory_space<vmem>>, vector<48x32xf32>
    %cst_68 = arith.constant 0.000000e+00 : f32
    %113 = vector.shape_cast %20 : vector<48x1xi1> to vector<48x1xi1>
    %114 = vector.broadcast %113 : vector<48x1xi1> to vector<48x32xi1>
    %115 = vector.broadcast %cst_68 : f32 to vector<48x32xf32>
    %116 = arith.select %114, %115, %112 : vector<48x32xi1>, vector<48x32xf32>
    %117 = tpu.concatenate %102, %109, %116 in 1 : vector<48x64xf32>, vector<48x32xf32>, vector<48x32xf32> -> vector<48x128xf32>
    %c0_69 = arith.constant 0 : index
    %c0_70 = arith.constant 0 : index
    %118 = vector.load %arg8[%c0_69, %c0_70] : memref<128x64xf32, #tpu.memory_space<vmem>>, vector<128x64xf32>
    %cst_71 = arith.constant dense<0.000000e+00> : vector<48x64xf32>
    %119 = tpu.matmul %117, %118, %cst_71 {dimension_numbers = #tpu.dot_dimension_numbers<[1], [0], [0], [1], [0, 0, 1, 1], [], []>} : vector<48x128xf32>, vector<128x64xf32>, vector<48x64xf32> -> vector<48x64xf32>
    %c0_72 = arith.constant 0 : index
    %c0_73 = arith.constant 0 : index
    %120 = vector.load %arg9[%c0_72, %c0_73] : memref<1x64xf32, #tpu.memory_space<vmem>>, vector<1x64xf32>
    %121 = vector.broadcast %120 : vector<1x64xf32> to vector<48x64xf32>
    %122 = arith.addf %119, %121 : vector<48x64xf32>
    %123 = math.tanh %122 : vector<48x64xf32>
    %cst_74 = arith.constant 0.000000e+00 : f32
    %124 = vector.shape_cast %22 : vector<48x1xi1> to vector<48x1xi1>
    %125 = vector.broadcast %124 : vector<48x1xi1> to vector<48x64xi1>
    %126 = vector.broadcast %cst_74 : f32 to vector<48x64xf32>
    %127 = arith.select %125, %126, %123 : vector<48x64xi1>, vector<48x64xf32>
    %128 = vector.extract_strided_slice %127 {offsets = [0, 48], sizes = [48, 16], strides = [1, 1]} : vector<48x64xf32> to vector<48x16xf32>
    %c8_75 = arith.constant 8 : index
    %c0_76 = arith.constant 0 : index
    %129 = vector.load %arg13[%c8_75, %c0_76] : memref<64x32xf32, #tpu.memory_space<vmem>>, vector<48x16xf32>
    tpu.vector_store %arg13[%c8_75, %c0_76], %128 {strides = array<i32>} : memref<64x32xf32, #tpu.memory_space<vmem>>, vector<48x16xf32>,
    %c7_77 = arith.constant 7 : index
    %c0_78 = arith.constant 0 : index
    %130 = vector.load %arg13[%c7_77, %c0_78] : memref<64x32xf32, #tpu.memory_space<vmem>>, vector<48x16xf32>
    %cst_79 = arith.constant 0.000000e+00 : f32
    %131 = vector.shape_cast %18 : vector<48x1xi1> to vector<48x1xi1>
    %132 = vector.broadcast %131 : vector<48x1xi1> to vector<48x16xi1>
    %133 = vector.broadcast %cst_79 : f32 to vector<48x16xf32>
    %134 = arith.select %132, %133, %130 : vector<48x16xi1>, vector<48x16xf32>
    %135 = tpu.concatenate %127, %134 in 1 : vector<48x64xf32>, vector<48x16xf32> -> vector<48x80xf32>
    %c0_80 = arith.constant 0 : index
    %c0_81 = arith.constant 0 : index
    %136 = vector.load %arg10[%c0_80, %c0_81] : memref<80x8xf32, #tpu.memory_space<vmem>>, vector<80x8xf32>
    %cst_82 = arith.constant dense<0.000000e+00> : vector<48x8xf32>
    %137 = tpu.matmul %135, %136, %cst_82 {dimension_numbers = #tpu.dot_dimension_numbers<[1], [0], [0], [1], [0, 0, 1, 1], [], []>} : vector<48x80xf32>, vector<80x8xf32>, vector<48x8xf32> -> vector<48x8xf32>
    %c0_83 = arith.constant 0 : index
    %c0_84 = arith.constant 0 : index
    %138 = vector.load %arg11[%c0_83, %c0_84] : memref<1x8xf32, #tpu.memory_space<vmem>>, vector<1x8xf32>
    %139 = vector.broadcast %138 : vector<1x8xf32> to vector<48x8xf32>
    %140 = arith.addf %137, %139 : vector<48x8xf32>
    %141 = math.exp %140 : vector<48x8xf32>
    %c0_85 = arith.constant 0 : index
    %c0_86 = arith.constant 0 : index
    %c0_87 = arith.constant 0 : index
    %142 = vector.load %arg12[%c0_85, %c0_86, %c0_87] : memref<1x48x8xf32, #tpu.memory_space<vmem>>, vector<1x48x8xf32>
    %143 = vector.shape_cast %142 : vector<1x48x8xf32> to vector<48x8xf32>
    %144 = vector.shape_cast %141 : vector<48x8xf32> to vector<1x48x8xf32>
    tpu.vector_store %arg12[%c0_85, %c0_86, %c0_87], %144 {strides = array<i32>} : memref<1x48x8xf32, #tpu.memory_space<vmem>>, vector<1x48x8xf32>,
    return
  }
  func.func @transform_0(%arg0: i32) -> (i32, i32, i32) {
    %c0_i32 = arith.constant 0 : i32
    %c0_i32_0 = arith.constant 0 : i32
    %c0_i32_1 = arith.constant 0 : i32
    return %arg0, %c0_i32, %c0_i32_0 : i32, i32, i32
  }
  func.func @transform_1(%arg0: i32) -> (i32, i32) {
    %c0_i32 = arith.constant 0 : i32
    %c0_i32_0 = arith.constant 0 : i32
    %c0_i32_1 = arith.constant 0 : i32
    return %c0_i32, %c0_i32_0 : i32, i32
  }
  func.func @transform_2(%arg0: i32) -> (i32, i32) {
    %c0_i32 = arith.constant 0 : i32
    %c0_i32_0 = arith.constant 0 : i32
    %c0_i32_1 = arith.constant 0 : i32
    return %c0_i32, %c0_i32_0 : i32, i32
  }
  func.func @transform_3(%arg0: i32) -> (i32, i32, i32) {
    %c0_i32 = arith.constant 0 : i32
    %c0_i32_0 = arith.constant 0 : i32
    %c0_i32_1 = arith.constant 0 : i32
    %c0_i32_2 = arith.constant 0 : i32
    return %c0_i32, %c0_i32_0, %c0_i32_1 : i32, i32, i32
  }
  func.func @transform_4(%arg0: i32) -> (i32, i32, i32) {
    %c0_i32 = arith.constant 0 : i32
    %c0_i32_0 = arith.constant 0 : i32
    %c0_i32_1 = arith.constant 0 : i32
    %c0_i32_2 = arith.constant 0 : i32
    return %c0_i32, %c0_i32_0, %c0_i32_1 : i32, i32, i32
  }
  func.func @transform_5(%arg0: i32) -> (i32, i32) {
    %c0_i32 = arith.constant 0 : i32
    %c0_i32_0 = arith.constant 0 : i32
    %c0_i32_1 = arith.constant 0 : i32
    return %c0_i32, %c0_i32_0 : i32, i32
  }
  func.func @transform_6(%arg0: i32) -> (i32, i32) {
    %c0_i32 = arith.constant 0 : i32
    %c0_i32_0 = arith.constant 0 : i32
    %c0_i32_1 = arith.constant 0 : i32
    return %c0_i32, %c0_i32_0 : i32, i32
  }
  func.func @transform_7(%arg0: i32) -> (i32, i32) {
    %c0_i32 = arith.constant 0 : i32
    %c0_i32_0 = arith.constant 0 : i32
    %c0_i32_1 = arith.constant 0 : i32
    return %c0_i32, %c0_i32_0 : i32, i32
  }
  func.func @transform_8(%arg0: i32) -> (i32, i32) {
    %c0_i32 = arith.constant 0 : i32
    %c0_i32_0 = arith.constant 0 : i32
    %c0_i32_1 = arith.constant 0 : i32
    return %c0_i32, %c0_i32_0 : i32, i32
  }
  func.func @transform_9(%arg0: i32) -> (i32, i32) {
    %c0_i32 = arith.constant 0 : i32
    %c0_i32_0 = arith.constant 0 : i32
    %c0_i32_1 = arith.constant 0 : i32
    return %c0_i32, %c0_i32_0 : i32, i32
  }
  func.func @transform_10(%arg0: i32) -> (i32, i32) {
    %c0_i32 = arith.constant 0 : i32
    %c0_i32_0 = arith.constant 0 : i32
    %c0_i32_1 = arith.constant 0 : i32
    return %c0_i32, %c0_i32_0 : i32, i32
  }
  func.func @transform_11(%arg0: i32) -> (i32, i32, i32) {
    %c0_i32 = arith.constant 0 : i32
    %c0_i32_0 = arith.constant 0 : i32
    %c0_i32_1 = arith.constant 0 : i32
    return %arg0, %c0_i32, %c0_i32_0 : i32, i32, i32
  }
}

</mosaic_0001>

<llo_original>
// kernel: decoder_forward.1
$region0: #{decoder_forward.1}
  #allocation0 [shape = 'u32[]', space=smem, size = 0x4, offset = 0x4, fixed_abs, tag = 'smem constant byte address 0x4 - core index']
  #allocation1 [shape = 'u32[144,128]{1,0:T(1,128)}', space=vmem, size = 0x12000, scoped, tag = 'internal scratch']
  #allocation2 [shape = 'f32[64,32]{1,0:T(8,128)}', space=vmem, size = 0x8000, scoped, tag = 'scratch operand']
  %s0 = inlined_call_operand.vmem [shape: f32[1,48,8], index: 0, kind: input, shape index: {}]
  %s1 = inlined_call_operand.vmem [shape: f32[24,32], index: 1, kind: input, shape index: {}]
  %s2 = inlined_call_operand.vmem [shape: f32[1,32], index: 2, kind: input, shape index: {}]
  %s3 = inlined_call_operand.vmem [shape: f32[2,96,16], index: 3, kind: input, shape index: {}]
  %s4 = inlined_call_operand.vmem [shape: f32[2,16,32], index: 4, kind: input, shape index: {}]
  %s5 = inlined_call_operand.vmem [shape: f32[96,64], index: 5, kind: input, shape index: {}]
  %s6 = inlined_call_operand.vmem [shape: f32[1,64], index: 6, kind: input, shape index: {}]
  %s7 = inlined_call_operand.vmem [shape: f32[128,64], index: 7, kind: input, shape index: {}]
  %s8 = inlined_call_operand.vmem [shape: f32[1,64], index: 8, kind: input, shape index: {}]
  %s9 = inlined_call_operand.vmem [shape: f32[80,8], index: 9, kind: input, shape index: {}]
  %s10 = inlined_call_operand.vmem [shape: f32[1,8], index: 10, kind: input, shape index: {}]
  %s11 = inlined_call_operand.vmem [shape: f32[1,48,8], index: 11, kind: output, shape index: {}]
  %s12 = sld [smem:[#allocation0]]
  $region54: #{decoder_forward.1} parent=0
    _
  %s14 = ssub.s32 1, %s12
  %s15 = scalar_select 0, %s14, %s12
  // Predicated region
  $region2: #{decoder_forward.1} parent=0 // pred_check
    _
  $region3: #{decoder_forward.1} parent=0 // pred_check_branch
    %17 = sbr.rel (0) target = $region5
  $region4: #{decoder_forward.1} parent=0 // pred_region
    _
  $region5: #{decoder_forward.1} parent=0 // pred_fallthru
    _
  // Predicated region
  $region6: #{decoder_forward.1} parent=0 // pred_check
    _
  $region7: #{decoder_forward.1} parent=0 // pred_check_branch
    %19 = sbr.rel (0) target = $region9
  $region8: #{decoder_forward.1} parent=0 // pred_region
    _
  $region9: #{decoder_forward.1} parent=0 // pred_fallthru
    _
  // Predicated region
  $region10: #{decoder_forward.1} parent=0 // pred_check
    _
  $region11: #{decoder_forward.1} parent=0 // pred_check_branch
    %21 = sbr.rel (0) target = $region13
  $region12: #{decoder_forward.1} parent=0 // pred_region
    _
  $region13: #{decoder_forward.1} parent=0 // pred_fallthru
    _
  // Predicated region
  $region14: #{decoder_forward.1} parent=0 // pred_check
    _
  $region15: #{decoder_forward.1} parent=0 // pred_check_branch
    %23 = sbr.rel (0) target = $region17
  $region16: #{decoder_forward.1} parent=0 // pred_region
    _
  $region17: #{decoder_forward.1} parent=0 // pred_fallthru
    _
  // Predicated region
  $region18: #{decoder_forward.1} parent=0 // pred_check
    _
  $region19: #{decoder_forward.1} parent=0 // pred_check_branch
    %25 = sbr.rel (0) target = $region21
  $region20: #{decoder_forward.1} parent=0 // pred_region
    _
  $region21: #{decoder_forward.1} parent=0 // pred_fallthru
    _
  // Predicated region
  $region22: #{decoder_forward.1} parent=0 // pred_check
    _
  $region23: #{decoder_forward.1} parent=0 // pred_check_branch
    %27 = sbr.rel (0) target = $region25
  $region24: #{decoder_forward.1} parent=0 // pred_region
    _
  $region25: #{decoder_forward.1} parent=0 // pred_fallthru
    _
  // Predicated region
  $region26: #{decoder_forward.1} parent=0 // pred_check
    _
  $region27: #{decoder_forward.1} parent=0 // pred_check_branch
    %29 = sbr.rel (0) target = $region29
  $region28: #{decoder_forward.1} parent=0 // pred_region
    _
  $region29: #{decoder_forward.1} parent=0 // pred_fallthru
    _
  // Predicated region
  $region30: #{decoder_forward.1} parent=0 // pred_check
    _
  $region31: #{decoder_forward.1} parent=0 // pred_check_branch
    %31 = sbr.rel (0) target = $region33
  $region32: #{decoder_forward.1} parent=0 // pred_region
    _
  $region33: #{decoder_forward.1} parent=0 // pred_fallthru
    _
  // Predicated region
  $region34: #{decoder_forward.1} parent=0 // pred_check
    _
  $region35: #{decoder_forward.1} parent=0 // pred_check_branch
    %33 = sbr.rel (0) target = $region37
  $region36: #{decoder_forward.1} parent=0 // pred_region
    _
  $region37: #{decoder_forward.1} parent=0 // pred_fallthru
    _
  // Predicated region
  $region38: #{decoder_forward.1} parent=0 // pred_check
    _
  $region39: #{decoder_forward.1} parent=0 // pred_check_branch
    %35 = sbr.rel (0) target = $region41
  $region40: #{decoder_forward.1} parent=0 // pred_region
    _
  $region41: #{decoder_forward.1} parent=0 // pred_fallthru
    _
  // Predicated region
  $region42: #{decoder_forward.1} parent=0 // pred_check
    _
  $region43: #{decoder_forward.1} parent=0 // pred_check_branch
    %37 = sbr.rel (0) target = $region45
  $region44: #{decoder_forward.1} parent=0 // pred_region
    _
  $region45: #{decoder_forward.1} parent=0 // pred_fallthru
    _
  %v38 = vlaneseq
  %v39 = vshrl.u32 %v38, 7
  %v40 = vadd.s32 %v39, 8
  %v41 = vadd.s32 %v39, 16
  %v42 = vadd.s32 %v39, 24
  %v43 = vadd.s32 %v39, 32
  %v44 = vadd.s32 %v39, 40
  %vm45 = vcmp.lt.s32.totalorder %v39, 0
  %v46 = vsub.s32 0, %v39
  %v47 = vsel %vm45, %v46, %v39
  %v48 = vmul.u32.u64.compose %v47, 2863311531
  %v49 = vextract.low.u32 %v48
  %v50 = vextract.high.u32 %v48
  %v51 = vshrl.u32 %v50, 4
  %v52 = vmul.u32 %v51, 24
  %v53 = vsub.s32 %v47, %v52
  %v54 = vsub.s32 0, %v53
  %v55 = vsel %vm45, %v54, %v53
  %vm56 = vcmp.lt.s32.totalorder %v40, 0
  %v57 = vsub.s32 0, %v40
  %v58 = vsel %vm56, %v57, %v40
  %v59 = vmul.u32.u64.compose %v58, 2863311531
  %v60 = vextract.low.u32 %v59
  %v61 = vextract.high.u32 %v59
  %v62 = vshrl.u32 %v61, 4
  %v63 = vmul.u32 %v62, 24
  %v64 = vsub.s32 %v58, %v63
  %v65 = vsub.s32 0, %v64
  %v66 = vsel %vm56, %v65, %v64
  %vm67 = vcmp.lt.s32.totalorder %v41, 0
  %v68 = vsub.s32 0, %v41
  %v69 = vsel %vm67, %v68, %v41
  %v70 = vmul.u32.u64.compose %v69, 2863311531
  %v71 = vextract.low.u32 %v70
  %v72 = vextract.high.u32 %v70
  %v73 = vshrl.u32 %v72, 4
  %v74 = vmul.u32 %v73, 24
  %v75 = vsub.s32 %v69, %v74
  %v76 = vsub.s32 0, %v75
  %v77 = vsel %vm67, %v76, %v75
  %vm78 = vcmp.lt.s32.totalorder %v42, 0
  %v79 = vsub.s32 0, %v42
  %v80 = vsel %vm78, %v79, %v42
  %v81 = vmul.u32.u64.compose %v80, 2863311531
  %v82 = vextract.low.u32 %v81
  %v83 = vextract.high.u32 %v81
  %v84 = vshrl.u32 %v83, 4
  %v85 = vmul.u32 %v84, 24
  %v86 = vsub.s32 %v80, %v85
  %v87 = vsub.s32 0, %v86
  %v88 = vsel %vm78, %v87, %v86
  %vm89 = vcmp.lt.s32.totalorder %v43, 0
  %v90 = vsub.s32 0, %v43
  %v91 = vsel %vm89, %v90, %v43
  %v92 = vmul.u32.u64.compose %v91, 2863311531
  %v93 = vextract.low.u32 %v92
  %v94 = vextract.high.u32 %v92
  %v95 = vshrl.u32 %v94, 4
  %v96 = vmul.u32 %v95, 24
  %v97 = vsub.s32 %v91, %v96
  %v98 = vsub.s32 0, %v97
  %v99 = vsel %vm89, %v98, %v97
  %vm100 = vcmp.lt.s32.totalorder %v44, 0
  %v101 = vsub.s32 0, %v44
  %v102 = vsel %vm100, %v101, %v44
  %v103 = vmul.u32.u64.compose %v102, 2863311531
  %v104 = vextract.low.u32 %v103
  %v105 = vextract.high.u32 %v103
  %v106 = vshrl.u32 %v105, 4
  %v107 = vmul.u32 %v106, 24
  %v108 = vsub.s32 %v102, %v107
  %v109 = vsub.s32 0, %v108
  %v110 = vsel %vm100, %v109, %v108
  %vm111 = vcmp.ne.s32.totalorder %v55, 0
  %vm112 = vcmp.ne.s32.totalorder %v66, 0
  %vm113 = vcmp.ne.s32.totalorder %v77, 0
  %vm114 = vcmp.ne.s32.totalorder %v88, 0
  %vm115 = vcmp.ne.s32.totalorder %v99, 0
  %vm116 = vcmp.ne.s32.totalorder %v110, 0
  %vm117 = vcmp.lt.s32.totalorder %v55, 0
  %vm118 = vcmp.lt.s32.totalorder %v66, 0
  %vm119 = vcmp.lt.s32.totalorder %v77, 0
  %vm120 = vcmp.lt.s32.totalorder %v88, 0
  %vm121 = vcmp.lt.s32.totalorder %v99, 0
  %vm122 = vcmp.lt.s32.totalorder %v110, 0
  %vm123 = vmand %vm117, %vm111
  %vm124 = vmand %vm118, %vm112
  %vm125 = vmand %vm119, %vm113
  %vm126 = vmand %vm120, %vm114
  %vm127 = vmand %vm121, %vm115
  %vm128 = vmand %vm122, %vm116
  %v129 = vadd.s32 %v55, 24
  %v130 = vadd.s32 %v66, 24
  %v131 = vadd.s32 %v77, 24
  %v132 = vadd.s32 %v88, 24
  %v133 = vadd.s32 %v99, 24
  %v134 = vadd.s32 %v110, 24
  %v135 = vsel %vm123, %v129, %v55
  %v136 = vsel %vm124, %v130, %v66
  %v137 = vsel %vm125, %v131, %v77
  %v138 = vsel %vm126, %v132, %v88
  %v139 = vsel %vm127, %v133, %v99
  %v140 = vsel %vm128, %v134, %v110
  %vm141 = vcmp.eq.s32.totalorder %v135, 0
  %vm142 = vcmp.eq.s32.totalorder %v136, 0
  %vm143 = vcmp.eq.s32.totalorder %v137, 0
  %vm144 = vcmp.eq.s32.totalorder %v138, 0
  %vm145 = vcmp.eq.s32.totalorder %v139, 0
  %vm146 = vcmp.eq.s32.totalorder %v140, 0
  %vm147 = vcmp.eq.s32.totalorder %v135, 15
  %vm148 = vcmp.eq.s32.totalorder %v136, 15
  %vm149 = vcmp.eq.s32.totalorder %v137, 15
  %vm150 = vcmp.eq.s32.totalorder %v138, 15
  %vm151 = vcmp.eq.s32.totalorder %v139, 15
  %vm152 = vcmp.eq.s32.totalorder %v140, 15
  %vm153 = vcmp.ge.s32.totalorder %v135, 16
  %vm154 = vcmp.ge.s32.totalorder %v136, 16
  %vm155 = vcmp.ge.s32.totalorder %v137, 16
  %vm156 = vcmp.ge.s32.totalorder %v138, 16
  %vm157 = vcmp.ge.s32.totalorder %v139, 16
  %vm158 = vcmp.ge.s32.totalorder %v140, 16
  %v159 = vld [vmem:[%s0] sm:$0xff]
  %v160 = vld [vmem:[%s0 + $0x8] sm:$0xff]
  %v161 = vld [vmem:[%s0 + $0x10] sm:$0xff]
  %v162 = vld [vmem:[%s0 + $0x18] sm:$0xff]
  %v163 = vld [vmem:[%s0 + $0x20] sm:$0xff]
  %v164 = vld [vmem:[%s0 + $0x28] sm:$0xff]
  %vm165 = vcmask 64512
  %166 = vst.msk [vmem:[#allocation2 + $0x8] sm:$0xff] %vm165, %v159
  %167 = vst.msk [vmem:[#allocation2 + $0x10] sm:$0xff] %vm165, %v160
  %168 = vst.msk [vmem:[#allocation2 + $0x18] sm:$0xff] %vm165, %v161
  %169 = vst.msk [vmem:[#allocation2 + $0x20] sm:$0xff] %vm165, %v162
  %170 = vst.msk [vmem:[#allocation2 + $0x28] sm:$0xff] %vm165, %v163
  %171 = vst.msk [vmem:[#allocation2 + $0x30] sm:$0xff] %vm165, %v164
  %v172 = vld [vmem:[#allocation2 + $0x7] sm:$0xff]
  %v173 = vld [vmem:[#allocation2 + $0xf] sm:$0xff]
  %v174 = vld [vmem:[#allocation2 + $0x17] sm:$0xff]
  %v175 = vld [vmem:[#allocation2 + $0x1f] sm:$0xff]
  %v176 = vld [vmem:[#allocation2 + $0x27] sm:$0xff]
  %v177 = vld [vmem:[#allocation2 + $0x2f] sm:$0xff]
  %v178 = vsel %vm141, 1, 0
  %v179 = vsel %vm142, 1, 0
  %v180 = vsel %vm143, 1, 0
  %v181 = vsel %vm144, 1, 0
  %v182 = vsel %vm145, 1, 0
  %v183 = vsel %vm146, 1, 0
  %vm184 = vcmp.eq.s32.totalorder %v178, 1
  %vm185 = vcmp.eq.s32.totalorder %v179, 1
  %vm186 = vcmp.eq.s32.totalorder %v180, 1
  %vm187 = vcmp.eq.s32.totalorder %v181, 1
  %vm188 = vcmp.eq.s32.totalorder %v182, 1
  %vm189 = vcmp.eq.s32.totalorder %v183, 1
  %v190 = vsel %vm184, 0.0, %v172
  %v191 = vsel %vm185, 0.0, %v173
  %v192 = vsel %vm186, 0.0, %v174
  %v193 = vsel %vm187, 0.0, %v175
  %v194 = vsel %vm188, 0.0, %v176
  %v195 = vsel %vm189, 0.0, %v177
  %v196 = vld [vmem:[#allocation2 + $0x9] sm:$0xff]
  %v197 = vld [vmem:[#allocation2 + $0x11] sm:$0xff]
  %v198 = vld [vmem:[#allocation2 + $0x19] sm:$0xff]
  %v199 = vld [vmem:[#allocation2 + $0x21] sm:$0xff]
  %v200 = vld [vmem:[#allocation2 + $0x29] sm:$0xff]
  %v201 = vld [vmem:[#allocation2 + $0x31] sm:$0xff]
  %v202 = vsel %vm147, 1, 0
  %v203 = vsel %vm148, 1, 0
  %v204 = vsel %vm149, 1, 0
  %v205 = vsel %vm150, 1, 0
  %v206 = vsel %vm151, 1, 0
  %v207 = vsel %vm152, 1, 0
  %vm208 = vcmp.eq.s32.totalorder %v202, 1
  %vm209 = vcmp.eq.s32.totalorder %v203, 1
  %vm210 = vcmp.eq.s32.totalorder %v204, 1
  %vm211 = vcmp.eq.s32.totalorder %v205, 1
  %vm212 = vcmp.eq.s32.totalorder %v206, 1
  %vm213 = vcmp.eq.s32.totalorder %v207, 1
  %v214 = vsel %vm208, 0.0, %v196
  %v215 = vsel %vm209, 0.0, %v197
  %v216 = vsel %vm210, 0.0, %v198
  %v217 = vsel %vm211, 0.0, %v199
  %v218 = vsel %vm212, 0.0, %v200
  %v219 = vsel %vm213, 0.0, %v201
  %226 = vrot.lane.b32.xlu0 %v159, 8
  %v227 = vpop.permute.xlu0 %226
  %228 = vrot.lane.b32.xlu0 %v160, 8
  %v229 = vpop.permute.xlu0 %228
  %230 = vrot.lane.b32.xlu0 %v161, 8
  %v231 = vpop.permute.xlu0 %230
  %232 = vrot.lane.b32.xlu0 %v162, 8
  %v233 = vpop.permute.xlu0 %232
  %234 = vrot.lane.b32.xlu0 %v163, 8
  %v235 = vpop.permute.xlu0 %234
  %236 = vrot.lane.b32.xlu0 %v164, 8
  %v237 = vpop.permute.xlu0 %236
  %250 = vrot.lane.b32.xlu0 %v214, 16
  %v251 = vpop.permute.xlu0 %250
  %252 = vrot.lane.b32.xlu0 %v215, 16
  %v253 = vpop.permute.xlu0 %252
  %254 = vrot.lane.b32.xlu0 %v216, 16
  %v255 = vpop.permute.xlu0 %254
  %256 = vrot.lane.b32.xlu0 %v217, 16
  %v257 = vpop.permute.xlu0 %256
  %258 = vrot.lane.b32.xlu0 %v218, 16
  %v259 = vpop.permute.xlu0 %258
  %260 = vrot.lane.b32.xlu0 %v219, 16
  %v261 = vpop.permute.xlu0 %260
  %v268 = vsel %vm165, %v190, %v227
  %v269 = vsel %vm165, %v191, %v229
  %v270 = vsel %vm165, %v192, %v231
  %v271 = vsel %vm165, %v193, %v233
  %v272 = vsel %vm165, %v194, %v235
  %v273 = vsel %vm165, %v195, %v237
  %vm274 = vcmask 130048
  %v275 = vsel %vm274, %v268, %v251
  %v276 = vsel %vm274, %v269, %v253
  %v277 = vsel %vm274, %v270, %v255
  %v278 = vsel %vm274, %v271, %v257
  %v279 = vsel %vm274, %v272, %v259
  %v280 = vsel %vm274, %v273, %v261
  %v281 = vld [vmem:[%s1] sm:$0xff]
  %v282 = vld [vmem:[%s1 + $0x8] sm:$0xff]
  %v283 = vld [vmem:[%s1 + $0x10] sm:$0xff]
  %v284 = vld [vmem:[%s2] sm:$0x1]
  %v286 = vlaneseq
  %v287 = vshrl.u32 %v286, 7
  %v288 = vsub.s32 0, %v287
  %v289 = vrot.slane %v284, %v288
  %vm291 = vcmask 195584
  %v293 = vsel %vm291, %v275, 0
  %v296 = vsel %vm291, %v276, 0
  %v299 = vsel %vm291, %v277, 0
  %v302 = vsel %vm291, %v278, 0
  %v305 = vsel %vm291, %v279, 0
  %v308 = vsel %vm291, %v280, 0
  %310 = vmatprep.subr.mxu0 0.0
  %311 = vmatpush1.msra.mxu0 %v281
  %312 = vmatprep.subr.mxu0 0.0
  %313 = vmatpush1.msra.mxu0 %v282
  %314 = vmatprep.subr.mxu0 0.0
  %315 = vmatpush1.msra.mxu0 %v283
  %316 = vmatprep.subr.mxu0 0.0
  %317 = vmatpush1.msra.mxu0 0.0
  %318 = vmatprep.subr.mxu0 0.0
  %319 = vmatpush1.msra.mxu0 0.0
  %320 = vmatprep.subr.mxu0 0.0
  %321 = vmatpush1.msra.mxu0 0.0
  %322 = vmatprep.subr.mxu0 0.0
  %323 = vmatpush1.msra.mxu0 0.0
  %324 = vmatprep.subr.mxu0 0.0
  %325 = vmatpush1.msra.mxu0 0.0
  %326 = vmatprep.subr.mxu0 0.0
  %327 = vmatpush1.msra.mxu0 0.0
  %328 = vmatprep.subr.mxu0 0.0
  %329 = vmatpush1.msra.mxu0 0.0
  %330 = vmatprep.subr.mxu0 0.0
  %331 = vmatpush1.msra.mxu0 0.0
  %332 = vmatprep.subr.mxu0 0.0
  %333 = vmatpush1.msra.mxu0 0.0
  %334 = vmatprep.subr.mxu0 0.0
  %335 = vmatpush1.msra.mxu0 0.0
  %336 = vmatprep.subr.mxu0 0.0
  %337 = vmatpush1.msra.mxu0 0.0
  %338 = vmatprep.subr.mxu0 0.0
  %339 = vmatpush1.msra.mxu0 0.0
  %340 = vmatprep.subr.mxu0 0.0
  %341 = vmatpush1.msra.mxu0 0.0
  %342 = vmatprep.subr.mxu0 0.0
  %343 = vmatpush1.msra.mxu0 0.0
  %344 = vmatprep.subr.mxu0 0.0
  %345 = vmatpush1.msra.mxu0 0.0
  %346 = vmatprep.subr.mxu0 0.0
  %347 = vmatpush1.msra.mxu0 0.0
  %348 = vmatprep.subr.mxu0 0.0
  %349 = vmatpush1.msra.mxu0 0.0
  %350 = vmatprep.subr.mxu0 0.0
  %351 = vmatpush1.msra.mxu0 0.0
  %352 = vmatprep.subr.mxu0 0.0
  %353 = vmatpush1.msra.mxu0 0.0
  %354 = vmatprep.subr.mxu0 0.0
  %355 = vmatpush1.msra.mxu0 0.0
  %356 = vmatprep.subr.mxu0 0.0
  %357 = vmatpush1.msra.mxu0 0.0
  %358 = vmatprep.subr.mxu0 0.0
  %359 = vmatpush1.msra.mxu0 0.0
  %360 = vmatprep.subr.mxu0 0.0
  %361 = vmatpush1.msra.mxu0 0.0
  %362 = vmatprep.subr.mxu0 0.0
  %363 = vmatpush1.msra.mxu0 0.0
  %364 = vmatprep.subr.mxu0 0.0
  %365 = vmatpush1.msra.mxu0 0.0
  %366 = vmatprep.subr.mxu0 0.0
  %367 = vmatpush1.msra.mxu0 0.0
  %368 = vmatprep.subr.mxu0 0.0
  %369 = vmatpush1.msra.mxu0 0.0
  %370 = vmatprep.subr.mxu0 0.0
  %371 = vmatpush1.msra.mxu0 0.0
  %372 = vmatprep.subr.mxu0 0.0
  %373 = vmatpush1.msra.mxu0 0.0
  %374 = vmatprep.mubr.f32.mxu0 0.0
  %375 = vmatmul.mubr.f32.gmra.mrb[0].mxu0 %v293
  %v376 = vpop.f32.mrb[0].mxu0
  %v377 = vadd.f32 %v289, %v376
  %v378 = vpop.f32.mrb[0].mxu0
  %379 = vmatprep.mubr.f32.mxu0 0.0
  %380 = vmatmul.mubr.f32.gmra.mrb[0].mxu0 %v296
  %v381 = vpop.f32.mrb[0].mxu0
  %v382 = vadd.f32 %v289, %v381
  %v383 = vpop.f32.mrb[0].mxu0
  %384 = vmatprep.mubr.f32.mxu0 0.0
  %385 = vmatmul.mubr.f32.gmra.mrb[0].mxu0 %v299
  %v386 = vpop.f32.mrb[0].mxu0
  %v387 = vadd.f32 %v289, %v386
  %v388 = vpop.f32.mrb[0].mxu0
  %389 = vmatprep.mubr.f32.mxu0 0.0
  %390 = vmatmul.mubr.f32.gmra.mrb[0].mxu0 %v302
  %v391 = vpop.f32.mrb[0].mxu0
  %v392 = vadd.f32 %v289, %v391
  %v393 = vpop.f32.mrb[0].mxu0
  %394 = vmatprep.mubr.f32.mxu0 0.0
  %395 = vmatmul.mubr.f32.gmra.mrb[0].mxu0 %v305
  %v396 = vpop.f32.mrb[0].mxu0
  %v397 = vadd.f32 %v289, %v396
  %v398 = vpop.f32.mrb[0].mxu0
  %399 = vmatprep.mubr.f32.mxu0 0.0
  %400 = vmatmul.mubr.f32.gmra.mrb[0].mxu0 %v308
  %v401 = vpop.f32.mrb[0].mxu0
  %v402 = vadd.f32 %v289, %v401
  %v403 = vpop.f32.mrb[0].mxu0
  %404 = vdwg.mxu0
  %v405 = vtanh.pop %v377
  %v406 = vtanh.pop %v382
  %v407 = vtanh.pop %v387
  %v408 = vtanh.pop %v392
  %v409 = vtanh.pop %v397
  %v410 = vtanh.pop %v402
  %vm411 = vcmask 261120
  %412 = vst.msk [vmem:[#allocation2 + $0x8] sm:$0xff] %vm411, %v405
  %413 = vst.msk [vmem:[#allocation2 + $0x10] sm:$0xff] %vm411, %v406
  %414 = vst.msk [vmem:[#allocation2 + $0x18] sm:$0xff] %vm411, %v407
  %415 = vst.msk [vmem:[#allocation2 + $0x20] sm:$0xff] %vm411, %v408
  %416 = vst.msk [vmem:[#allocation2 + $0x28] sm:$0xff] %vm411, %v409
  %417 = vst.msk [vmem:[#allocation2 + $0x30] sm:$0xff] %vm411, %v410
  %v418 = vld [vmem:[#allocation2 + $0x7] sm:$0xff]
  %v419 = vld [vmem:[#allocation2 + $0xf] sm:$0xff]
  %v420 = vld [vmem:[#allocation2 + $0x17] sm:$0xff]
  %v421 = vld [vmem:[#allocation2 + $0x1f] sm:$0xff]
  %v422 = vld [vmem:[#allocation2 + $0x27] sm:$0xff]
  %v423 = vld [vmem:[#allocation2 + $0x2f] sm:$0xff]
  %v424 = vsel %vm184, 0.0, %v418
  %v425 = vsel %vm185, 0.0, %v419
  %v426 = vsel %vm186, 0.0, %v420
  %v427 = vsel %vm187, 0.0, %v421
  %v428 = vsel %vm188, 0.0, %v422
  %v429 = vsel %vm189, 0.0, %v423
  %v430 = vld [vmem:[#allocation2 + $0x9] sm:$0xff]
  %v431 = vld [vmem:[#allocation2 + $0x11] sm:$0xff]
  %v432 = vld [vmem:[#allocation2 + $0x19] sm:$0xff]
  %v433 = vld [vmem:[#allocation2 + $0x21] sm:$0xff]
  %v434 = vld [vmem:[#allocation2 + $0x29] sm:$0xff]
  %v435 = vld [vmem:[#allocation2 + $0x31] sm:$0xff]
  %v436 = vsel %vm208, 0.0, %v430
  %v437 = vsel %vm209, 0.0, %v431
  %v438 = vsel %vm210, 0.0, %v432
  %v439 = vsel %vm211, 0.0, %v433
  %v440 = vsel %vm212, 0.0, %v434
  %v441 = vsel %vm213, 0.0, %v435
  %448 = vrot.lane.b32.xlu0 %v405, 32
  %v449 = vpop.permute.xlu0 %448
  %450 = vrot.lane.b32.xlu0 %v406, 32
  %v451 = vpop.permute.xlu0 %450
  %452 = vrot.lane.b32.xlu0 %v407, 32
  %v453 = vpop.permute.xlu0 %452
  %454 = vrot.lane.b32.xlu0 %v408, 32
  %v455 = vpop.permute.xlu0 %454
  %456 = vrot.lane.b32.xlu0 %v409, 32
  %v457 = vpop.permute.xlu0 %456
  %458 = vrot.lane.b32.xlu0 %v410, 32
  %v459 = vpop.permute.xlu0 %458
  %472 = vrot.lane.b32.xlu0 %v436, 64
  %v473 = vpop.permute.xlu0 %472
  %474 = vrot.lane.b32.xlu0 %v437, 64
  %v475 = vpop.permute.xlu0 %474
  %476 = vrot.lane.b32.xlu0 %v438, 64
  %v477 = vpop.permute.xlu0 %476
  %478 = vrot.lane.b32.xlu0 %v439, 64
  %v479 = vpop.permute.xlu0 %478
  %480 = vrot.lane.b32.xlu0 %v440, 64
  %v481 = vpop.permute.xlu0 %480
  %482 = vrot.lane.b32.xlu0 %v441, 64
  %v483 = vpop.permute.xlu0 %482
  %v490 = vsel %vm411, %v424, %v449
  %v491 = vsel %vm411, %v425, %v451
  %v492 = vsel %vm411, %v426, %v453
  %v493 = vsel %vm411, %v427, %v455
  %v494 = vsel %vm411, %v428, %v457
  %v495 = vsel %vm411, %v429, %v459
  %vm496 = vcmask 523264
  %v497 = vsel %vm496, %v490, %v473
  %v498 = vsel %vm496, %v491, %v475
  %v499 = vsel %vm496, %v492, %v477
  %v500 = vsel %vm496, %v493, %v479
  %v501 = vsel %vm496, %v494, %v481
  %v502 = vsel %vm496, %v495, %v483
  %v503 = vld [vmem:[%s3] sm:$0xff]
  %v504 = vld [vmem:[%s3 + $0x8] sm:$0xff]
  %v505 = vld [vmem:[%s3 + $0x10] sm:$0xff]
  %v506 = vld [vmem:[%s3 + $0x18] sm:$0xff]
  %v507 = vld [vmem:[%s3 + $0x20] sm:$0xff]
  %v508 = vld [vmem:[%s3 + $0x28] sm:$0xff]
  %v509 = vld [vmem:[%s3 + $0x30] sm:$0xff]
  %v510 = vld [vmem:[%s3 + $0x38] sm:$0xff]
  %v511 = vld [vmem:[%s3 + $0x40] sm:$0xff]
  %v512 = vld [vmem:[%s3 + $0x48] sm:$0xff]
  %v513 = vld [vmem:[%s3 + $0x50] sm:$0xff]
  %v514 = vld [vmem:[%s3 + $0x58] sm:$0xff]
  %vm515 = vcmask 785408
  %v517 = vsel %vm515, %v497, 0
  %v520 = vsel %vm515, %v498, 0
  %v523 = vsel %vm515, %v499, 0
  %v526 = vsel %vm515, %v500, 0
  %v529 = vsel %vm515, %v501, 0
  %v532 = vsel %vm515, %v502, 0
  %534 = vmatprep.subr.mxu0 0.0
  %535 = vmatpush1.msra.mxu0 %v503
  %536 = vmatprep.subr.mxu0 0.0
  %537 = vmatpush1.msra.mxu0 %v504
  %538 = vmatprep.subr.mxu0 0.0
  %539 = vmatpush1.msra.mxu0 %v505
  %540 = vmatprep.subr.mxu0 0.0
  %541 = vmatpush1.msra.mxu0 %v506
  %542 = vmatprep.subr.mxu0 0.0
  %543 = vmatpush1.msra.mxu0 %v507
  %544 = vmatprep.subr.mxu0 0.0
  %545 = vmatpush1.msra.mxu0 %v508
  %546 = vmatprep.subr.mxu0 0.0
  %547 = vmatpush1.msra.mxu0 %v509
  %548 = vmatprep.subr.mxu0 0.0
  %549 = vmatpush1.msra.mxu0 %v510
  %550 = vmatprep.subr.mxu0 0.0
  %551 = vmatpush1.msra.mxu0 %v511
  %552 = vmatprep.subr.mxu0 0.0
  %553 = vmatpush1.msra.mxu0 %v512
  %554 = vmatprep.subr.mxu0 0.0
  %555 = vmatpush1.msra.mxu0 %v513
  %556 = vmatprep.subr.mxu0 0.0
  %557 = vmatpush1.msra.mxu0 %v514
  %558 = vmatprep.subr.mxu0 0.0
  %559 = vmatpush1.msra.mxu0 0.0
  %560 = vmatprep.subr.mxu0 0.0
  %561 = vmatpush1.msra.mxu0 0.0
  %562 = vmatprep.subr.mxu0 0.0
  %563 = vmatpush1.msra.mxu0 0.0
  %564 = vmatprep.subr.mxu0 0.0
  %565 = vmatpush1.msra.mxu0 0.0
  %566 = vmatprep.subr.mxu0 0.0
  %567 = vmatpush1.msra.mxu0 0.0
  %568 = vmatprep.subr.mxu0 0.0
  %569 = vmatpush1.msra.mxu0 0.0
  %570 = vmatprep.subr.mxu0 0.0
  %571 = vmatpush1.msra.mxu0 0.0
  %572 = vmatprep.subr.mxu0 0.0
  %573 = vmatpush1.msra.mxu0 0.0
  %574 = vmatprep.subr.mxu0 0.0
  %575 = vmatpush1.msra.mxu0 0.0
  %576 = vmatprep.subr.mxu0 0.0
  %577 = vmatpush1.msra.mxu0 0.0
  %578 = vmatprep.subr.mxu0 0.0
  %579 = vmatpush1.msra.mxu0 0.0
  %580 = vmatprep.subr.mxu0 0.0
  %581 = vmatpush1.msra.mxu0 0.0
  %582 = vmatprep.subr.mxu0 0.0
  %583 = vmatpush1.msra.mxu0 0.0
  %584 = vmatprep.subr.mxu0 0.0
  %585 = vmatpush1.msra.mxu0 0.0
  %586 = vmatprep.subr.mxu0 0.0
  %587 = vmatpush1.msra.mxu0 0.0
  %588 = vmatprep.subr.mxu0 0.0
  %589 = vmatpush1.msra.mxu0 0.0
  %590 = vmatprep.subr.mxu0 0.0
  %591 = vmatpush1.msra.mxu0 0.0
  %592 = vmatprep.subr.mxu0 0.0
  %593 = vmatpush1.msra.mxu0 0.0
  %594 = vmatprep.subr.mxu0 0.0
  %595 = vmatpush1.msra.mxu0 0.0
  %596 = vmatprep.subr.mxu0 0.0
  %597 = vmatpush1.msra.mxu0 0.0
  %598 = vmatprep.mubr.f32.mxu0 0.0
  %599 = vmatmul.mubr.f32.gmra.mrb[0].mxu0 %v517
  %v600 = vpop.f32.mrb[0].mxu0
  %v601 = vadd.f32 0.0, %v600
  %v602 = vpop.f32.mrb[0].mxu0
  %603 = vmatprep.mubr.f32.mxu0 0.0
  %604 = vmatmul.mubr.f32.gmra.mrb[0].mxu0 %v520
  %v605 = vpop.f32.mrb[0].mxu0
  %v606 = vadd.f32 0.0, %v605
  %v607 = vpop.f32.mrb[0].mxu0
  %608 = vmatprep.mubr.f32.mxu0 0.0
  %609 = vmatmul.mubr.f32.gmra.mrb[0].mxu0 %v523
  %v610 = vpop.f32.mrb[0].mxu0
  %v611 = vadd.f32 0.0, %v610
  %v612 = vpop.f32.mrb[0].mxu0
  %613 = vmatprep.mubr.f32.mxu0 0.0
  %614 = vmatmul.mubr.f32.gmra.mrb[0].mxu0 %v526
  %v615 = vpop.f32.mrb[0].mxu0
  %v616 = vadd.f32 0.0, %v615
  %v617 = vpop.f32.mrb[0].mxu0
  %618 = vmatprep.mubr.f32.mxu0 0.0
  %619 = vmatmul.mubr.f32.gmra.mrb[0].mxu0 %v529
  %v620 = vpop.f32.mrb[0].mxu0
  %v621 = vadd.f32 0.0, %v620
  %v622 = vpop.f32.mrb[0].mxu0
  %623 = vmatprep.mubr.f32.mxu0 0.0
  %624 = vmatmul.mubr.f32.gmra.mrb[0].mxu0 %v532
  %v625 = vpop.f32.mrb[0].mxu0
  %v626 = vadd.f32 0.0, %v625
  %v627 = vpop.f32.mrb[0].mxu0
  %628 = vdwg.mxu0
  %v629 = vtanh.pop %v601
  %v630 = vtanh.pop %v606
  %v631 = vtanh.pop %v611
  %v632 = vtanh.pop %v616
  %v633 = vtanh.pop %v621
  %v634 = vtanh.pop %v626
  %v635 = vld [vmem:[%s4] sm:$0xff]
  %v636 = vld [vmem:[%s4 + $0x8] sm:$0xff]
  %v638 = vsel %vm274, %v629, 0
  %v641 = vsel %vm274, %v630, 0
  %v644 = vsel %vm274, %v631, 0
  %v647 = vsel %vm274, %v632, 0
  %v650 = vsel %vm274, %v633, 0
  %v653 = vsel %vm274, %v634, 0
  %655 = vmatprep.subr.mxu0 0.0
  %656 = vmatpush1.msra.mxu0 %v635
  %657 = vmatprep.subr.mxu0 0.0
  %658 = vmatpush1.msra.mxu0 %v636
  %659 = vmatprep.subr.mxu0 0.0
  %660 = vmatpush1.msra.mxu0 0.0
  %661 = vmatprep.subr.mxu0 0.0
  %662 = vmatpush1.msra.mxu0 0.0
  %663 = vmatprep.subr.mxu0 0.0
  %664 = vmatpush1.msra.mxu0 0.0
  %665 = vmatprep.subr.mxu0 0.0
  %666 = vmatpush1.msra.mxu0 0.0
  %667 = vmatprep.subr.mxu0 0.0
  %668 = vmatpush1.msra.mxu0 0.0
  %669 = vmatprep.subr.mxu0 0.0
  %670 = vmatpush1.msra.mxu0 0.0
  %671 = vmatprep.subr.mxu0 0.0
  %672 = vmatpush1.msra.mxu0 0.0
  %673 = vmatprep.subr.mxu0 0.0
  %674 = vmatpush1.msra.mxu0 0.0
  %675 = vmatprep.subr.mxu0 0.0
  %676 = vmatpush1.msra.mxu0 0.0
  %677 = vmatprep.subr.mxu0 0.0
  %678 = vmatpush1.msra.mxu0 0.0
  %679 = vmatprep.subr.mxu0 0.0
  %680 = vmatpush1.msra.mxu0 0.0
  %681 = vmatprep.subr.mxu0 0.0
  %682 = vmatpush1.msra.mxu0 0.0
  %683 = vmatprep.subr.mxu0 0.0
  %684 = vmatpush1.msra.mxu0 0.0
  %685 = vmatprep.subr.mxu0 0.0
  %686 = vmatpush1.msra.mxu0 0.0
  %687 = vmatprep.subr.mxu0 0.0
  %688 = vmatpush1.msra.mxu0 0.0
  %689 = vmatprep.subr.mxu0 0.0
  %690 = vmatpush1.msra.mxu0 0.0
  %691 = vmatprep.subr.mxu0 0.0
  %692 = vmatpush1.msra.mxu0 0.0
  %693 = vmatprep.subr.mxu0 0.0
  %694 = vmatpush1.msra.mxu0 0.0
  %695 = vmatprep.subr.mxu0 0.0
  %696 = vmatpush1.msra.mxu0 0.0
  %697 = vmatprep.subr.mxu0 0.0
  %698 = vmatpush1.msra.mxu0 0.0
  %699 = vmatprep.subr.mxu0 0.0
  %700 = vmatpush1.msra.mxu0 0.0
  %701 = vmatprep.subr.mxu0 0.0
  %702 = vmatpush1.msra.mxu0 0.0
  %703 = vmatprep.subr.mxu0 0.0
  %704 = vmatpush1.msra.mxu0 0.0
  %705 = vmatprep.subr.mxu0 0.0
  %706 = vmatpush1.msra.mxu0 0.0
  %707 = vmatprep.subr.mxu0 0.0
  %708 = vmatpush1.msra.mxu0 0.0
  %709 = vmatprep.subr.mxu0 0.0
  %710 = vmatpush1.msra.mxu0 0.0
  %711 = vmatprep.subr.mxu0 0.0
  %712 = vmatpush1.msra.mxu0 0.0
  %713 = vmatprep.subr.mxu0 0.0
  %714 = vmatpush1.msra.mxu0 0.0
  %715 = vmatprep.subr.mxu0 0.0
  %716 = vmatpush1.msra.mxu0 0.0
  %717 = vmatprep.subr.mxu0 0.0
  %718 = vmatpush1.msra.mxu0 0.0
  %719 = vmatprep.mubr.f32.mxu0 0.0
  %720 = vmatmul.mubr.f32.gmra.mrb[0].mxu0 %v638
  %v721 = vpop.f32.mrb[0].mxu0
  %v722 = vadd.f32 0.0, %v721
  %v723 = vpop.f32.mrb[0].mxu0
  %724 = vmatprep.mubr.f32.mxu0 0.0
  %725 = vmatmul.mubr.f32.gmra.mrb[0].mxu0 %v641
  %v726 = vpop.f32.mrb[0].mxu0
  %v727 = vadd.f32 0.0, %v726
  %v728 = vpop.f32.mrb[0].mxu0
  %729 = vmatprep.mubr.f32.mxu0 0.0
  %730 = vmatmul.mubr.f32.gmra.mrb[0].mxu0 %v644
  %v731 = vpop.f32.mrb[0].mxu0
  %v732 = vadd.f32 0.0, %v731
  %v733 = vpop.f32.mrb[0].mxu0
  %734 = vmatprep.mubr.f32.mxu0 0.0
  %735 = vmatmul.mubr.f32.gmra.mrb[0].mxu0 %v647
  %v736 = vpop.f32.mrb[0].mxu0
  %v737 = vadd.f32 0.0, %v736
  %v738 = vpop.f32.mrb[0].mxu0
  %739 = vmatprep.mubr.f32.mxu0 0.0
  %740 = vmatmul.mubr.f32.gmra.mrb[0].mxu0 %v650
  %v741 = vpop.f32.mrb[0].mxu0
  %v742 = vadd.f32 0.0, %v741
  %v743 = vpop.f32.mrb[0].mxu0
  %744 = vmatprep.mubr.f32.mxu0 0.0
  %745 = vmatmul.mubr.f32.gmra.mrb[0].mxu0 %v653
  %v746 = vpop.f32.mrb[0].mxu0
  %v747 = vadd.f32 0.0, %v746
  %v748 = vpop.f32.mrb[0].mxu0
  %749 = vdwg.mxu0
  %v750 = vadd.f32 %v377, %v722
  %v751 = vadd.f32 %v382, %v727
  %v752 = vadd.f32 %v387, %v732
  %v753 = vadd.f32 %v392, %v737
  %v754 = vadd.f32 %v397, %v742
  %v755 = vadd.f32 %v402, %v747
  %v756 = vtanh.pop %v750
  %v757 = vtanh.pop %v751
  %v758 = vtanh.pop %v752
  %v759 = vtanh.pop %v753
  %v760 = vtanh.pop %v754
  %v761 = vtanh.pop %v755
  %762 = vst.msk [vmem:[#allocation2 + $0x8] sm:$0xff] %vm411, %v756
  %763 = vst.msk [vmem:[#allocation2 + $0x10] sm:$0xff] %vm411, %v757
  %764 = vst.msk [vmem:[#allocation2 + $0x18] sm:$0xff] %vm411, %v758
  %765 = vst.msk [vmem:[#allocation2 + $0x20] sm:$0xff] %vm411, %v759
  %766 = vst.msk [vmem:[#allocation2 + $0x28] sm:$0xff] %vm411, %v760
  %767 = vst.msk [vmem:[#allocation2 + $0x30] sm:$0xff] %vm411, %v761
  %v768 = vld [vmem:[#allocation2 + $0x7] sm:$0xff]
  %v769 = vld [vmem:[#allocation2 + $0xf] sm:$0xff]
  %v770 = vld [vmem:[#allocation2 + $0x17] sm:$0xff]
  %v771 = vld [vmem:[#allocation2 + $0x1f] sm:$0xff]
  %v772 = vld [vmem:[#allocation2 + $0x27] sm:$0xff]
  %v773 = vld [vmem:[#allocation2 + $0x2f] sm:$0xff]
  %v774 = vsel %vm184, 0.0, %v768
  %v775 = vsel %vm185, 0.0, %v769
  %v776 = vsel %vm186, 0.0, %v770
  %v777 = vsel %vm187, 0.0, %v771
  %v778 = vsel %vm188, 0.0, %v772
  %v779 = vsel %vm189, 0.0, %v773
  %v780 = vld [vmem:[#allocation2 + $0x9] sm:$0xff]
  %v781 = vld [vmem:[#allocation2 + $0x11] sm:$0xff]
  %v782 = vld [vmem:[#allocation2 + $0x19] sm:$0xff]
  %v783 = vld [vmem:[#allocation2 + $0x21] sm:$0xff]
  %v784 = vld [vmem:[#allocation2 + $0x29] sm:$0xff]
  %v785 = vld [vmem:[#allocation2 + $0x31] sm:$0xff]
  %v786 = vsel %vm208, 0.0, %v780
  %v787 = vsel %vm209, 0.0, %v781
  %v788 = vsel %vm210, 0.0, %v782
  %v789 = vsel %vm211, 0.0, %v783
  %v790 = vsel %vm212, 0.0, %v784
  %v791 = vsel %vm213, 0.0, %v785
  %798 = vrot.lane.b32.xlu0 %v756, 32
  %v799 = vpop.permute.xlu0 %798
  %800 = vrot.lane.b32.xlu0 %v757, 32
  %v801 = vpop.permute.xlu0 %800
  %802 = vrot.lane.b32.xlu0 %v758, 32
  %v803 = vpop.permute.xlu0 %802
  %804 = vrot.lane.b32.xlu0 %v759, 32
  %v805 = vpop.permute.xlu0 %804
  %806 = vrot.lane.b32.xlu0 %v760, 32
  %v807 = vpop.permute.xlu0 %806
  %808 = vrot.lane.b32.xlu0 %v761, 32
  %v809 = vpop.permute.xlu0 %808
  %822 = vrot.lane.b32.xlu0 %v786, 64
  %v823 = vpop.permute.xlu0 %822
  %824 = vrot.lane.b32.xlu0 %v787, 64
  %v825 = vpop.permute.xlu0 %824
  %826 = vrot.lane.b32.xlu0 %v788, 64
  %v827 = vpop.permute.xlu0 %826
  %828 = vrot.lane.b32.xlu0 %v789, 64
  %v829 = vpop.permute.xlu0 %828
  %830 = vrot.lane.b32.xlu0 %v790, 64
  %v831 = vpop.permute.xlu0 %830
  %832 = vrot.lane.b32.xlu0 %v791, 64
  %v833 = vpop.permute.xlu0 %832
  %v840 = vsel %vm411, %v774, %v799
  %v841 = vsel %vm411, %v775, %v801
  %v842 = vsel %vm411, %v776, %v803
  %v843 = vsel %vm411, %v777, %v805
  %v844 = vsel %vm411, %v778, %v807
  %v845 = vsel %vm411, %v779, %v809
  %v846 = vsel %vm496, %v840, %v823
  %v847 = vsel %vm496, %v841, %v825
  %v848 = vsel %vm496, %v842, %v827
  %v849 = vsel %vm496, %v843, %v829
  %v850 = vsel %vm496, %v844, %v831
  %v851 = vsel %vm496, %v845, %v833
  %s852 = scalar_lea.vmem %s3, 96
  %v853 = vld [vmem:[%s852] sm:$0xff]
  %v854 = vld [vmem:[%s852 + $0x8] sm:$0xff]
  %v855 = vld [vmem:[%s852 + $0x10] sm:$0xff]
  %v856 = vld [vmem:[%s852 + $0x18] sm:$0xff]
  %v857 = vld [vmem:[%s852 + $0x20] sm:$0xff]
  %v858 = vld [vmem:[%s852 + $0x28] sm:$0xff]
  %v859 = vld [vmem:[%s852 + $0x30] sm:$0xff]
  %v860 = vld [vmem:[%s852 + $0x38] sm:$0xff]
  %v861 = vld [vmem:[%s852 + $0x40] sm:$0xff]
  %v862 = vld [vmem:[%s852 + $0x48] sm:$0xff]
  %v863 = vld [vmem:[%s852 + $0x50] sm:$0xff]
  %v864 = vld [vmem:[%s852 + $0x58] sm:$0xff]
  %v866 = vsel %vm515, %v846, 0
  %v869 = vsel %vm515, %v847, 0
  %v872 = vsel %vm515, %v848, 0
  %v875 = vsel %vm515, %v849, 0
  %v878 = vsel %vm515, %v850, 0
  %v881 = vsel %vm515, %v851, 0
  %883 = vmatprep.subr.mxu0 0.0
  %884 = vmatpush1.msra.mxu0 %v853
  %885 = vmatprep.subr.mxu0 0.0
  %886 = vmatpush1.msra.mxu0 %v854
  %887 = vmatprep.subr.mxu0 0.0
  %888 = vmatpush1.msra.mxu0 %v855
  %889 = vmatprep.subr.mxu0 0.0
  %890 = vmatpush1.msra.mxu0 %v856
  %891 = vmatprep.subr.mxu0 0.0
  %892 = vmatpush1.msra.mxu0 %v857
  %893 = vmatprep.subr.mxu0 0.0
  %894 = vmatpush1.msra.mxu0 %v858
  %895 = vmatprep.subr.mxu0 0.0
  %896 = vmatpush1.msra.mxu0 %v859
  %897 = vmatprep.subr.mxu0 0.0
  %898 = vmatpush1.msra.mxu0 %v860
  %899 = vmatprep.subr.mxu0 0.0
  %900 = vmatpush1.msra.mxu0 %v861
  %901 = vmatprep.subr.mxu0 0.0
  %902 = vmatpush1.msra.mxu0 %v862
  %903 = vmatprep.subr.mxu0 0.0
  %904 = vmatpush1.msra.mxu0 %v863
  %905 = vmatprep.subr.mxu0 0.0
  %906 = vmatpush1.msra.mxu0 %v864
  %907 = vmatprep.subr.mxu0 0.0
  %908 = vmatpush1.msra.mxu0 0.0
  %909 = vmatprep.subr.mxu0 0.0
  %910 = vmatpush1.msra.mxu0 0.0
  %911 = vmatprep.subr.mxu0 0.0
  %912 = vmatpush1.msra.mxu0 0.0
  %913 = vmatprep.subr.mxu0 0.0
  %914 = vmatpush1.msra.mxu0 0.0
  %915 = vmatprep.subr.mxu0 0.0
  %916 = vmatpush1.msra.mxu0 0.0
  %917 = vmatprep.subr.mxu0 0.0
  %918 = vmatpush1.msra.mxu0 0.0
  %919 = vmatprep.subr.mxu0 0.0
  %920 = vmatpush1.msra.mxu0 0.0
  %921 = vmatprep.subr.mxu0 0.0
  %922 = vmatpush1.msra.mxu0 0.0
  %923 = vmatprep.subr.mxu0 0.0
  %924 = vmatpush1.msra.mxu0 0.0
  %925 = vmatprep.subr.mxu0 0.0
  %926 = vmatpush1.msra.mxu0 0.0
  %927 = vmatprep.subr.mxu0 0.0
  %928 = vmatpush1.msra.mxu0 0.0
  %929 = vmatprep.subr.mxu0 0.0
  %930 = vmatpush1.msra.mxu0 0.0
  %931 = vmatprep.subr.mxu0 0.0
  %932 = vmatpush1.msra.mxu0 0.0
  %933 = vmatprep.subr.mxu0 0.0
  %934 = vmatpush1.msra.mxu0 0.0
  %935 = vmatprep.subr.mxu0 0.0
  %936 = vmatpush1.msra.mxu0 0.0
  %937 = vmatprep.subr.mxu0 0.0
  %938 = vmatpush1.msra.mxu0 0.0
  %939 = vmatprep.subr.mxu0 0.0
  %940 = vmatpush1.msra.mxu0 0.0
  %941 = vmatprep.subr.mxu0 0.0
  %942 = vmatpush1.msra.mxu0 0.0
  %943 = vmatprep.subr.mxu0 0.0
  %944 = vmatpush1.msra.mxu0 0.0
  %945 = vmatprep.subr.mxu0 0.0
  %946 = vmatpush1.msra.mxu0 0.0
  %947 = vmatprep.mubr.f32.mxu0 0.0
  %948 = vmatmul.mubr.f32.gmra.mrb[0].mxu0 %v866
  %v949 = vpop.f32.mrb[0].mxu0
  %v950 = vadd.f32 0.0, %v949
  %v951 = vpop.f32.mrb[0].mxu0
  %952 = vmatprep.mubr.f32.mxu0 0.0
  %953 = vmatmul.mubr.f32.gmra.mrb[0].mxu0 %v869
  %v954 = vpop.f32.mrb[0].mxu0
  %v955 = vadd.f32 0.0, %v954
  %v956 = vpop.f32.mrb[0].mxu0
  %957 = vmatprep.mubr.f32.mxu0 0.0
  %958 = vmatmul.mubr.f32.gmra.mrb[0].mxu0 %v872
  %v959 = vpop.f32.mrb[0].mxu0
  %v960 = vadd.f32 0.0, %v959
  %v961 = vpop.f32.mrb[0].mxu0
  %962 = vmatprep.mubr.f32.mxu0 0.0
  %963 = vmatmul.mubr.f32.gmra.mrb[0].mxu0 %v875
  %v964 = vpop.f32.mrb[0].mxu0
  %v965 = vadd.f32 0.0, %v964
  %v966 = vpop.f32.mrb[0].mxu0
  %967 = vmatprep.mubr.f32.mxu0 0.0
  %968 = vmatmul.mubr.f32.gmra.mrb[0].mxu0 %v878
  %v969 = vpop.f32.mrb[0].mxu0
  %v970 = vadd.f32 0.0, %v969
  %v971 = vpop.f32.mrb[0].mxu0
  %972 = vmatprep.mubr.f32.mxu0 0.0
  %973 = vmatmul.mubr.f32.gmra.mrb[0].mxu0 %v881
  %v974 = vpop.f32.mrb[0].mxu0
  %v975 = vadd.f32 0.0, %v974
  %v976 = vpop.f32.mrb[0].mxu0
  %977 = vdwg.mxu0
  %v978 = vtanh.pop %v950
  %v979 = vtanh.pop %v955
  %v980 = vtanh.pop %v960
  %v981 = vtanh.pop %v965
  %v982 = vtanh.pop %v970
  %v983 = vtanh.pop %v975
  %s984 = scalar_lea.vmem %s4, 16
  %v985 = vld [vmem:[%s984] sm:$0xff]
  %v986 = vld [vmem:[%s984 + $0x8] sm:$0xff]
  %v988 = vsel %vm274, %v978, 0
  %v991 = vsel %vm274, %v979, 0
  %v994 = vsel %vm274, %v980, 0
  %v997 = vsel %vm274, %v981, 0
  %v1000 = vsel %vm274, %v982, 0
  %v1003 = vsel %vm274, %v983, 0
  %1005 = vmatprep.subr.mxu0 0.0
  %1006 = vmatpush1.msra.mxu0 %v985
  %1007 = vmatprep.subr.mxu0 0.0
  %1008 = vmatpush1.msra.mxu0 %v986
  %1009 = vmatprep.subr.mxu0 0.0
  %1010 = vmatpush1.msra.mxu0 0.0
  %1011 = vmatprep.subr.mxu0 0.0
  %1012 = vmatpush1.msra.mxu0 0.0
  %1013 = vmatprep.subr.mxu0 0.0
  %1014 = vmatpush1.msra.mxu0 0.0
  %1015 = vmatprep.subr.mxu0 0.0
  %1016 = vmatpush1.msra.mxu0 0.0
  %1017 = vmatprep.subr.mxu0 0.0
  %1018 = vmatpush1.msra.mxu0 0.0
  %1019 = vmatprep.subr.mxu0 0.0
  %1020 = vmatpush1.msra.mxu0 0.0
  %1021 = vmatprep.subr.mxu0 0.0
  %1022 = vmatpush1.msra.mxu0 0.0
  %1023 = vmatprep.subr.mxu0 0.0
  %1024 = vmatpush1.msra.mxu0 0.0
  %1025 = vmatprep.subr.mxu0 0.0
  %1026 = vmatpush1.msra.mxu0 0.0
  %1027 = vmatprep.subr.mxu0 0.0
  %1028 = vmatpush1.msra.mxu0 0.0
  %1029 = vmatprep.subr.mxu0 0.0
  %1030 = vmatpush1.msra.mxu0 0.0
  %1031 = vmatprep.subr.mxu0 0.0
  %1032 = vmatpush1.msra.mxu0 0.0
  %1033 = vmatprep.subr.mxu0 0.0
  %1034 = vmatpush1.msra.mxu0 0.0
  %1035 = vmatprep.subr.mxu0 0.0
  %1036 = vmatpush1.msra.mxu0 0.0
  %1037 = vmatprep.subr.mxu0 0.0
  %1038 = vmatpush1.msra.mxu0 0.0
  %1039 = vmatprep.subr.mxu0 0.0
  %1040 = vmatpush1.msra.mxu0 0.0
  %1041 = vmatprep.subr.mxu0 0.0
  %1042 = vmatpush1.msra.mxu0 0.0
  %1043 = vmatprep.subr.mxu0 0.0
  %1044 = vmatpush1.msra.mxu0 0.0
  %1045 = vmatprep.subr.mxu0 0.0
  %1046 = vmatpush1.msra.mxu0 0.0
  %1047 = vmatprep.subr.mxu0 0.0
  %1048 = vmatpush1.msra.mxu0 0.0
  %1049 = vmatprep.subr.mxu0 0.0
  %1050 = vmatpush1.msra.mxu0 0.0
  %1051 = vmatprep.subr.mxu0 0.0
  %1052 = vmatpush1.msra.mxu0 0.0
  %1053 = vmatprep.subr.mxu0 0.0
  %1054 = vmatpush1.msra.mxu0 0.0
  %1055 = vmatprep.subr.mxu0 0.0
  %1056 = vmatpush1.msra.mxu0 0.0
  %1057 = vmatprep.subr.mxu0 0.0
  %1058 = vmatpush1.msra.mxu0 0.0
  %1059 = vmatprep.subr.mxu0 0.0
  %1060 = vmatpush1.msra.mxu0 0.0
  %1061 = vmatprep.subr.mxu0 0.0
  %1062 = vmatpush1.msra.mxu0 0.0
  %1063 = vmatprep.subr.mxu0 0.0
  %1064 = vmatpush1.msra.mxu0 0.0
  %1065 = vmatprep.subr.mxu0 0.0
  %1066 = vmatpush1.msra.mxu0 0.0
  %1067 = vmatprep.subr.mxu0 0.0
  %1068 = vmatpush1.msra.mxu0 0.0
  %1069 = vmatprep.mubr.f32.mxu0 0.0
  %1070 = vmatmul.mubr.f32.gmra.mrb[0].mxu0 %v988
  %v1071 = vpop.f32.mrb[0].mxu0
  %v1072 = vadd.f32 0.0, %v1071
  %v1073 = vpop.f32.mrb[0].mxu0
  %1074 = vmatprep.mubr.f32.mxu0 0.0
  %1075 = vmatmul.mubr.f32.gmra.mrb[0].mxu0 %v991
  %v1076 = vpop.f32.mrb[0].mxu0
  %v1077 = vadd.f32 0.0, %v1076
  %v1078 = vpop.f32.mrb[0].mxu0
  %1079 = vmatprep.mubr.f32.mxu0 0.0
  %1080 = vmatmul.mubr.f32.gmra.mrb[0].mxu0 %v994
  %v1081 = vpop.f32.mrb[0].mxu0
  %v1082 = vadd.f32 0.0, %v1081
  %v1083 = vpop.f32.mrb[0].mxu0
  %1084 = vmatprep.mubr.f32.mxu0 0.0
  %1085 = vmatmul.mubr.f32.gmra.mrb[0].mxu0 %v997
  %v1086 = vpop.f32.mrb[0].mxu0
  %v1087 = vadd.f32 0.0, %v1086
  %v1088 = vpop.f32.mrb[0].mxu0
  %1089 = vmatprep.mubr.f32.mxu0 0.0
  %1090 = vmatmul.mubr.f32.gmra.mrb[0].mxu0 %v1000
  %v1091 = vpop.f32.mrb[0].mxu0
  %v1092 = vadd.f32 0.0, %v1091
  %v1093 = vpop.f32.mrb[0].mxu0
  %1094 = vmatprep.mubr.f32.mxu0 0.0
  %1095 = vmatmul.mubr.f32.gmra.mrb[0].mxu0 %v1003
  %v1096 = vpop.f32.mrb[0].mxu0
  %v1097 = vadd.f32 0.0, %v1096
  %v1098 = vpop.f32.mrb[0].mxu0
  %1099 = vdwg.mxu0
  %v1100 = vadd.f32 %v750, %v1072
  %v1101 = vadd.f32 %v751, %v1077
  %v1102 = vadd.f32 %v752, %v1082
  %v1103 = vadd.f32 %v753, %v1087
  %v1104 = vadd.f32 %v754, %v1092
  %v1105 = vadd.f32 %v755, %v1097
  %v1106 = vtanh.pop %v1100
  %v1107 = vtanh.pop %v1101
  %v1108 = vtanh.pop %v1102
  %v1109 = vtanh.pop %v1103
  %v1110 = vtanh.pop %v1104
  %v1111 = vtanh.pop %v1105
  %1112 = vst.msk [vmem:[#allocation2 + $0x8] sm:$0xff] %vm411, %v1106
  %1113 = vst.msk [vmem:[#allocation2 + $0x10] sm:$0xff] %vm411, %v1107
  %1114 = vst.msk [vmem:[#allocation2 + $0x18] sm:$0xff] %vm411, %v1108
  %1115 = vst.msk [vmem:[#allocation2 + $0x20] sm:$0xff] %vm411, %v1109
  %1116 = vst.msk [vmem:[#allocation2 + $0x28] sm:$0xff] %vm411, %v1110
  %1117 = vst.msk [vmem:[#allocation2 + $0x30] sm:$0xff] %vm411, %v1111
  %v1118 = vld [vmem:[#allocation2 + $0x7] sm:$0xff]
  %v1119 = vld [vmem:[#allocation2 + $0xf] sm:$0xff]
  %v1120 = vld [vmem:[#allocation2 + $0x17] sm:$0xff]
  %v1121 = vld [vmem:[#allocation2 + $0x1f] sm:$0xff]
  %v1122 = vld [vmem:[#allocation2 + $0x27] sm:$0xff]
  %v1123 = vld [vmem:[#allocation2 + $0x2f] sm:$0xff]
  %v1124 = vsel %vm184, 0.0, %v1118
  %v1125 = vsel %vm185, 0.0, %v1119
  %v1126 = vsel %vm186, 0.0, %v1120
  %v1127 = vsel %vm187, 0.0, %v1121
  %v1128 = vsel %vm188, 0.0, %v1122
  %v1129 = vsel %vm189, 0.0, %v1123
  %v1130 = vld [vmem:[#allocation2 + $0x9] sm:$0xff]
  %v1131 = vld [vmem:[#allocation2 + $0x11] sm:$0xff]
  %v1132 = vld [vmem:[#allocation2 + $0x19] sm:$0xff]
  %v1133 = vld [vmem:[#allocation2 + $0x21] sm:$0xff]
  %v1134 = vld [vmem:[#allocation2 + $0x29] sm:$0xff]
  %v1135 = vld [vmem:[#allocation2 + $0x31] sm:$0xff]
  %v1136 = vsel %vm208, 0.0, %v1130
  %v1137 = vsel %vm209, 0.0, %v1131
  %v1138 = vsel %vm210, 0.0, %v1132
  %v1139 = vsel %vm211, 0.0, %v1133
  %v1140 = vsel %vm212, 0.0, %v1134
  %v1141 = vsel %vm213, 0.0, %v1135
  %1148 = vrot.lane.b32.xlu0 %v1106, 32
  %v1149 = vpop.permute.xlu0 %1148
  %1150 = vrot.lane.b32.xlu0 %v1107, 32
  %v1151 = vpop.permute.xlu0 %1150
  %1152 = vrot.lane.b32.xlu0 %v1108, 32
  %v1153 = vpop.permute.xlu0 %1152
  %1154 = vrot.lane.b32.xlu0 %v1109, 32
  %v1155 = vpop.permute.xlu0 %1154
  %1156 = vrot.lane.b32.xlu0 %v1110, 32
  %v1157 = vpop.permute.xlu0 %1156
  %1158 = vrot.lane.b32.xlu0 %v1111, 32
  %v1159 = vpop.permute.xlu0 %1158
  %1172 = vrot.lane.b32.xlu0 %v1136, 64
  %v1173 = vpop.permute.xlu0 %1172
  %1174 = vrot.lane.b32.xlu0 %v1137, 64
  %v1175 = vpop.permute.xlu0 %1174
  %1176 = vrot.lane.b32.xlu0 %v1138, 64
  %v1177 = vpop.permute.xlu0 %1176
  %1178 = vrot.lane.b32.xlu0 %v1139, 64
  %v1179 = vpop.permute.xlu0 %1178
  %1180 = vrot.lane.b32.xlu0 %v1140, 64
  %v1181 = vpop.permute.xlu0 %1180
  %1182 = vrot.lane.b32.xlu0 %v1141, 64
  %v1183 = vpop.permute.xlu0 %1182
  %v1190 = vsel %vm411, %v1124, %v1149
  %v1191 = vsel %vm411, %v1125, %v1151
  %v1192 = vsel %vm411, %v1126, %v1153
  %v1193 = vsel %vm411, %v1127, %v1155
  %v1194 = vsel %vm411, %v1128, %v1157
  %v1195 = vsel %vm411, %v1129, %v1159
  %v1196 = vsel %vm496, %v1190, %v1173
  %v1197 = vsel %vm496, %v1191, %v1175
  %v1198 = vsel %vm496, %v1192, %v1177
  %v1199 = vsel %vm496, %v1193, %v1179
  %v1200 = vsel %vm496, %v1194, %v1181
  %v1201 = vsel %vm496, %v1195, %v1183
  %v1202 = vld [vmem:[%s5] sm:$0xff]
  %v1203 = vld [vmem:[%s5 + $0x8] sm:$0xff]
  %v1204 = vld [vmem:[%s5 + $0x10] sm:$0xff]
  %v1205 = vld [vmem:[%s5 + $0x18] sm:$0xff]
  %v1206 = vld [vmem:[%s5 + $0x20] sm:$0xff]
  %v1207 = vld [vmem:[%s5 + $0x28] sm:$0xff]
  %v1208 = vld [vmem:[%s5 + $0x30] sm:$0xff]
  %v1209 = vld [vmem:[%s5 + $0x38] sm:$0xff]
  %v1210 = vld [vmem:[%s5 + $0x40] sm:$0xff]
  %v1211 = vld [vmem:[%s5 + $0x48] sm:$0xff]
  %v1212 = vld [vmem:[%s5 + $0x50] sm:$0xff]
  %v1213 = vld [vmem:[%s5 + $0x58] sm:$0xff]
  %v1214 = vld [vmem:[%s6] sm:$0x1]
  %v1216 = vlaneseq
  %v1217 = vshrl.u32 %v1216, 7
  %v1218 = vsub.s32 0, %v1217
  %v1219 = vrot.slane %v1214, %v1218
  %v1222 = vsel %vm515, %v1196, 0
  %v1225 = vsel %vm515, %v1197, 0
  %v1228 = vsel %vm515, %v1198, 0
  %v1231 = vsel %vm515, %v1199, 0
  %v1234 = vsel %vm515, %v1200, 0
  %v1237 = vsel %vm515, %v1201, 0
  %1239 = vmatprep.subr.mxu0 0.0
  %1240 = vmatpush1.msra.mxu0 %v1202
  %1241 = vmatprep.subr.mxu0 0.0
  %1242 = vmatpush1.msra.mxu0 %v1203
  %1243 = vmatprep.subr.mxu0 0.0
  %1244 = vmatpush1.msra.mxu0 %v1204
  %1245 = vmatprep.subr.mxu0 0.0
  %1246 = vmatpush1.msra.mxu0 %v1205
  %1247 = vmatprep.subr.mxu0 0.0
  %1248 = vmatpush1.msra.mxu0 %v1206
  %1249 = vmatprep.subr.mxu0 0.0
  %1250 = vmatpush1.msra.mxu0 %v1207
  %1251 = vmatprep.subr.mxu0 0.0
  %1252 = vmatpush1.msra.mxu0 %v1208
  %1253 = vmatprep.subr.mxu0 0.0
  %1254 = vmatpush1.msra.mxu0 %v1209
  %1255 = vmatprep.subr.mxu0 0.0
  %1256 = vmatpush1.msra.mxu0 %v1210
  %1257 = vmatprep.subr.mxu0 0.0
  %1258 = vmatpush1.msra.mxu0 %v1211
  %1259 = vmatprep.subr.mxu0 0.0
  %1260 = vmatpush1.msra.mxu0 %v1212
  %1261 = vmatprep.subr.mxu0 0.0
  %1262 = vmatpush1.msra.mxu0 %v1213
  %1263 = vmatprep.subr.mxu0 0.0
  %1264 = vmatpush1.msra.mxu0 0.0
  %1265 = vmatprep.subr.mxu0 0.0
  %1266 = vmatpush1.msra.mxu0 0.0
  %1267 = vmatprep.subr.mxu0 0.0
  %1268 = vmatpush1.msra.mxu0 0.0
  %1269 = vmatprep.subr.mxu0 0.0
  %1270 = vmatpush1.msra.mxu0 0.0
  %1271 = vmatprep.subr.mxu0 0.0
  %1272 = vmatpush1.msra.mxu0 0.0
  %1273 = vmatprep.subr.mxu0 0.0
  %1274 = vmatpush1.msra.mxu0 0.0
  %1275 = vmatprep.subr.mxu0 0.0
  %1276 = vmatpush1.msra.mxu0 0.0
  %1277 = vmatprep.subr.mxu0 0.0
  %1278 = vmatpush1.msra.mxu0 0.0
  %1279 = vmatprep.subr.mxu0 0.0
  %1280 = vmatpush1.msra.mxu0 0.0
  %1281 = vmatprep.subr.mxu0 0.0
  %1282 = vmatpush1.msra.mxu0 0.0
  %1283 = vmatprep.subr.mxu0 0.0
  %1284 = vmatpush1.msra.mxu0 0.0
  %1285 = vmatprep.subr.mxu0 0.0
  %1286 = vmatpush1.msra.mxu0 0.0
  %1287 = vmatprep.subr.mxu0 0.0
  %1288 = vmatpush1.msra.mxu0 0.0
  %1289 = vmatprep.subr.mxu0 0.0
  %1290 = vmatpush1.msra.mxu0 0.0
  %1291 = vmatprep.subr.mxu0 0.0
  %1292 = vmatpush1.msra.mxu0 0.0
  %1293 = vmatprep.subr.mxu0 0.0
  %1294 = vmatpush1.msra.mxu0 0.0
  %1295 = vmatprep.subr.mxu0 0.0
  %1296 = vmatpush1.msra.mxu0 0.0
  %1297 = vmatprep.subr.mxu0 0.0
  %1298 = vmatpush1.msra.mxu0 0.0
  %1299 = vmatprep.subr.mxu0 0.0
  %1300 = vmatpush1.msra.mxu0 0.0
  %1301 = vmatprep.subr.mxu0 0.0
  %1302 = vmatpush1.msra.mxu0 0.0
  %1303 = vmatprep.mubr.f32.mxu0 0.0
  %1304 = vmatmul.mubr.f32.gmra.mrb[0].mxu0 %v1222
  %v1305 = vpop.f32.mrb[0].mxu0
  %v1306 = vadd.f32 %v1219, %v1305
  %v1307 = vpop.f32.mrb[0].mxu0
  %1308 = vmatprep.mubr.f32.mxu0 0.0
  %1309 = vmatmul.mubr.f32.gmra.mrb[0].mxu0 %v1225
  %v1310 = vpop.f32.mrb[0].mxu0
  %v1311 = vadd.f32 %v1219, %v1310
  %v1312 = vpop.f32.mrb[0].mxu0
  %1313 = vmatprep.mubr.f32.mxu0 0.0
  %1314 = vmatmul.mubr.f32.gmra.mrb[0].mxu0 %v1228
  %v1315 = vpop.f32.mrb[0].mxu0
  %v1316 = vadd.f32 %v1219, %v1315
  %v1317 = vpop.f32.mrb[0].mxu0
  %1318 = vmatprep.mubr.f32.mxu0 0.0
  %1319 = vmatmul.mubr.f32.gmra.mrb[0].mxu0 %v1231
  %v1320 = vpop.f32.mrb[0].mxu0
  %v1321 = vadd.f32 %v1219, %v1320
  %v1322 = vpop.f32.mrb[0].mxu0
  %1323 = vmatprep.mubr.f32.mxu0 0.0
  %1324 = vmatmul.mubr.f32.gmra.mrb[0].mxu0 %v1234
  %v1325 = vpop.f32.mrb[0].mxu0
  %v1326 = vadd.f32 %v1219, %v1325
  %v1327 = vpop.f32.mrb[0].mxu0
  %1328 = vmatprep.mubr.f32.mxu0 0.0
  %1329 = vmatmul.mubr.f32.gmra.mrb[0].mxu0 %v1237
  %v1330 = vpop.f32.mrb[0].mxu0
  %v1331 = vadd.f32 %v1219, %v1330
  %v1332 = vpop.f32.mrb[0].mxu0
  %1333 = vdwg.mxu0
  %v1334 = vtanh.pop %v1306
  %v1335 = vtanh.pop %v1311
  %v1336 = vtanh.pop %v1316
  %v1337 = vtanh.pop %v1321
  %v1338 = vtanh.pop %v1326
  %v1339 = vtanh.pop %v1331
  %1346 = vrot.lane.b32.xlu0 %v1334, 96
  %v1347 = vpop.permute.xlu0 %1346
  %1348 = vrot.lane.b32.xlu0 %v1335, 96
  %v1349 = vpop.permute.xlu0 %1348
  %1350 = vrot.lane.b32.xlu0 %v1336, 96
  %v1351 = vpop.permute.xlu0 %1350
  %1352 = vrot.lane.b32.xlu0 %v1337, 96
  %v1353 = vpop.permute.xlu0 %1352
  %1354 = vrot.lane.b32.xlu0 %v1338, 96
  %v1355 = vpop.permute.xlu0 %1354
  %1356 = vrot.lane.b32.xlu0 %v1339, 96
  %v1357 = vpop.permute.xlu0 %1356
  %1364 = vst.msk [vmem:[#allocation2 + $0x8] sm:$0xff] %vm411, %v1347
  %1365 = vst.msk [vmem:[#allocation2 + $0x10] sm:$0xff] %vm411, %v1349
  %1366 = vst.msk [vmem:[#allocation2 + $0x18] sm:$0xff] %vm411, %v1351
  %1367 = vst.msk [vmem:[#allocation2 + $0x20] sm:$0xff] %vm411, %v1353
  %1368 = vst.msk [vmem:[#allocation2 + $0x28] sm:$0xff] %vm411, %v1355
  %1369 = vst.msk [vmem:[#allocation2 + $0x30] sm:$0xff] %vm411, %v1357
  %v1370 = vld [vmem:[#allocation2 + $0x7] sm:$0xff]
  %v1371 = vld [vmem:[#allocation2 + $0xf] sm:$0xff]
  %v1372 = vld [vmem:[#allocation2 + $0x17] sm:$0xff]
  %v1373 = vld [vmem:[#allocation2 + $0x1f] sm:$0xff]
  %v1374 = vld [vmem:[#allocation2 + $0x27] sm:$0xff]
  %v1375 = vld [vmem:[#allocation2 + $0x2f] sm:$0xff]
  %v1376 = vsel %vm184, 0.0, %v1370
  %v1377 = vsel %vm185, 0.0, %v1371
  %v1378 = vsel %vm186, 0.0, %v1372
  %v1379 = vsel %vm187, 0.0, %v1373
  %v1380 = vsel %vm188, 0.0, %v1374
  %v1381 = vsel %vm189, 0.0, %v1375
  %1382 = vst.msk [vmem:[#allocation2 + $0x8] sm:$0xff] %vm411, %v1334
  %1383 = vst.msk [vmem:[#allocation2 + $0x10] sm:$0xff] %vm411, %v1335
  %1384 = vst.msk [vmem:[#allocation2 + $0x18] sm:$0xff] %vm411, %v1336
  %1385 = vst.msk [vmem:[#allocation2 + $0x20] sm:$0xff] %vm411, %v1337
  %1386 = vst.msk [vmem:[#allocation2 + $0x28] sm:$0xff] %vm411, %v1338
  %1387 = vst.msk [vmem:[#allocation2 + $0x30] sm:$0xff] %vm411, %v1339
  %v1388 = vld [vmem:[#allocation2 + $0x9] sm:$0xff]
  %v1389 = vld [vmem:[#allocation2 + $0x11] sm:$0xff]
  %v1390 = vld [vmem:[#allocation2 + $0x19] sm:$0xff]
  %v1391 = vld [vmem:[#allocation2 + $0x21] sm:$0xff]
  %v1392 = vld [vmem:[#allocation2 + $0x29] sm:$0xff]
  %v1393 = vld [vmem:[#allocation2 + $0x31] sm:$0xff]
  %v1394 = vsel %vm208, 0.0, %v1388
  %v1395 = vsel %vm209, 0.0, %v1389
  %v1396 = vsel %vm210, 0.0, %v1390
  %v1397 = vsel %vm211, 0.0, %v1391
  %v1398 = vsel %vm212, 0.0, %v1392
  %v1399 = vsel %vm213, 0.0, %v1393
  %1406 = vrot.lane.b32.xlu0 %v1376, 64
  %v1407 = vpop.permute.xlu0 %1406
  %1408 = vrot.lane.b32.xlu0 %v1377, 64
  %v1409 = vpop.permute.xlu0 %1408
  %1410 = vrot.lane.b32.xlu0 %v1378, 64
  %v1411 = vpop.permute.xlu0 %1410
  %1412 = vrot.lane.b32.xlu0 %v1379, 64
  %v1413 = vpop.permute.xlu0 %1412
  %1414 = vrot.lane.b32.xlu0 %v1380, 64
  %v1415 = vpop.permute.xlu0 %1414
  %1416 = vrot.lane.b32.xlu0 %v1381, 64
  %v1417 = vpop.permute.xlu0 %1416
  %1430 = vrot.lane.b32.xlu0 %v1394, 96
  %v1431 = vpop.permute.xlu0 %1430
  %1432 = vrot.lane.b32.xlu0 %v1395, 96
  %v1433 = vpop.permute.xlu0 %1432
  %1434 = vrot.lane.b32.xlu0 %v1396, 96
  %v1435 = vpop.permute.xlu0 %1434
  %1436 = vrot.lane.b32.xlu0 %v1397, 96
  %v1437 = vpop.permute.xlu0 %1436
  %1438 = vrot.lane.b32.xlu0 %v1398, 96
  %v1439 = vpop.permute.xlu0 %1438
  %1440 = vrot.lane.b32.xlu0 %v1399, 96
  %v1441 = vpop.permute.xlu0 %1440
  %v1448 = vsel %vm496, %v1334, %v1407
  %v1449 = vsel %vm496, %v1335, %v1409
  %v1450 = vsel %vm496, %v1336, %v1411
  %v1451 = vsel %vm496, %v1337, %v1413
  %v1452 = vsel %vm496, %v1338, %v1415
  %v1453 = vsel %vm496, %v1339, %v1417
  %v1454 = vsel %vm515, %v1448, %v1431
  %v1455 = vsel %vm515, %v1449, %v1433
  %v1456 = vsel %vm515, %v1450, %v1435
  %v1457 = vsel %vm515, %v1451, %v1437
  %v1458 = vsel %vm515, %v1452, %v1439
  %v1459 = vsel %vm515, %v1453, %v1441
  %v1460 = vld [vmem:[%s7] sm:$0xff]
  %v1461 = vld [vmem:[%s7 + $0x8] sm:$0xff]
  %v1462 = vld [vmem:[%s7 + $0x10] sm:$0xff]
  %v1463 = vld [vmem:[%s7 + $0x18] sm:$0xff]
  %v1464 = vld [vmem:[%s7 + $0x20] sm:$0xff]
  %v1465 = vld [vmem:[%s7 + $0x28] sm:$0xff]
  %v1466 = vld [vmem:[%s7 + $0x30] sm:$0xff]
  %v1467 = vld [vmem:[%s7 + $0x38] sm:$0xff]
  %v1468 = vld [vmem:[%s7 + $0x40] sm:$0xff]
  %v1469 = vld [vmem:[%s7 + $0x48] sm:$0xff]
  %v1470 = vld [vmem:[%s7 + $0x50] sm:$0xff]
  %v1471 = vld [vmem:[%s7 + $0x58] sm:$0xff]
  %v1472 = vld [vmem:[%s7 + $0x60] sm:$0xff]
  %v1473 = vld [vmem:[%s7 + $0x68] sm:$0xff]
  %v1474 = vld [vmem:[%s7 + $0x70] sm:$0xff]
  %v1475 = vld [vmem:[%s7 + $0x78] sm:$0xff]
  %v1476 = vld [vmem:[%s8] sm:$0x1]
  %v1478 = vlaneseq
  %v1479 = vshrl.u32 %v1478, 7
  %v1480 = vsub.s32 0, %v1479
  %v1481 = vrot.slane %v1476, %v1480
  %1483 = vmatprep.subr.mxu0 0.0
  %1484 = vmatpush1.msra.mxu0 %v1460
  %1485 = vmatprep.subr.mxu0 0.0
  %1486 = vmatpush1.msra.mxu0 %v1461
  %1487 = vmatprep.subr.mxu0 0.0
  %1488 = vmatpush1.msra.mxu0 %v1462
  %1489 = vmatprep.subr.mxu0 0.0
  %1490 = vmatpush1.msra.mxu0 %v1463
  %1491 = vmatprep.subr.mxu0 0.0
  %1492 = vmatpush1.msra.mxu0 %v1464
  %1493 = vmatprep.subr.mxu0 0.0
  %1494 = vmatpush1.msra.mxu0 %v1465
  %1495 = vmatprep.subr.mxu0 0.0
  %1496 = vmatpush1.msra.mxu0 %v1466
  %1497 = vmatprep.subr.mxu0 0.0
  %1498 = vmatpush1.msra.mxu0 %v1467
  %1499 = vmatprep.subr.mxu0 0.0
  %1500 = vmatpush1.msra.mxu0 %v1468
  %1501 = vmatprep.subr.mxu0 0.0
  %1502 = vmatpush1.msra.mxu0 %v1469
  %1503 = vmatprep.subr.mxu0 0.0
  %1504 = vmatpush1.msra.mxu0 %v1470
  %1505 = vmatprep.subr.mxu0 0.0
  %1506 = vmatpush1.msra.mxu0 %v1471
  %1507 = vmatprep.subr.mxu0 0.0
  %1508 = vmatpush1.msra.mxu0 %v1472
  %1509 = vmatprep.subr.mxu0 0.0
  %1510 = vmatpush1.msra.mxu0 %v1473
  %1511 = vmatprep.subr.mxu0 0.0
  %1512 = vmatpush1.msra.mxu0 %v1474
  %1513 = vmatprep.subr.mxu0 0.0
  %1514 = vmatpush1.msra.mxu0 %v1475
  %1515 = vmatprep.subr.mxu0 0.0
  %1516 = vmatpush1.msra.mxu0 0.0
  %1517 = vmatprep.subr.mxu0 0.0
  %1518 = vmatpush1.msra.mxu0 0.0
  %1519 = vmatprep.subr.mxu0 0.0
  %1520 = vmatpush1.msra.mxu0 0.0
  %1521 = vmatprep.subr.mxu0 0.0
  %1522 = vmatpush1.msra.mxu0 0.0
  %1523 = vmatprep.subr.mxu0 0.0
  %1524 = vmatpush1.msra.mxu0 0.0
  %1525 = vmatprep.subr.mxu0 0.0
  %1526 = vmatpush1.msra.mxu0 0.0
  %1527 = vmatprep.subr.mxu0 0.0
  %1528 = vmatpush1.msra.mxu0 0.0
  %1529 = vmatprep.subr.mxu0 0.0
  %1530 = vmatpush1.msra.mxu0 0.0
  %1531 = vmatprep.subr.mxu0 0.0
  %1532 = vmatpush1.msra.mxu0 0.0
  %1533 = vmatprep.subr.mxu0 0.0
  %1534 = vmatpush1.msra.mxu0 0.0
  %1535 = vmatprep.subr.mxu0 0.0
  %1536 = vmatpush1.msra.mxu0 0.0
  %1537 = vmatprep.subr.mxu0 0.0
  %1538 = vmatpush1.msra.mxu0 0.0
  %1539 = vmatprep.subr.mxu0 0.0
  %1540 = vmatpush1.msra.mxu0 0.0
  %1541 = vmatprep.subr.mxu0 0.0
  %1542 = vmatpush1.msra.mxu0 0.0
  %1543 = vmatprep.subr.mxu0 0.0
  %1544 = vmatpush1.msra.mxu0 0.0
  %1545 = vmatprep.subr.mxu0 0.0
  %1546 = vmatpush1.msra.mxu0 0.0
  %1547 = vmatprep.mubr.f32.mxu0 0.0
  %1548 = vmatmul.mubr.f32.gmra.mrb[0].mxu0 %v1454
  %v1549 = vpop.f32.mrb[0].mxu0
  %v1550 = vadd.f32 %v1481, %v1549
  %v1551 = vpop.f32.mrb[0].mxu0
  %1552 = vmatprep.mubr.f32.mxu0 0.0
  %1553 = vmatmul.mubr.f32.gmra.mrb[0].mxu0 %v1455
  %v1554 = vpop.f32.mrb[0].mxu0
  %v1555 = vadd.f32 %v1481, %v1554
  %v1556 = vpop.f32.mrb[0].mxu0
  %1557 = vmatprep.mubr.f32.mxu0 0.0
  %1558 = vmatmul.mubr.f32.gmra.mrb[0].mxu0 %v1456
  %v1559 = vpop.f32.mrb[0].mxu0
  %v1560 = vadd.f32 %v1481, %v1559
  %v1561 = vpop.f32.mrb[0].mxu0
  %1562 = vmatprep.mubr.f32.mxu0 0.0
  %1563 = vmatmul.mubr.f32.gmra.mrb[0].mxu0 %v1457
  %v1564 = vpop.f32.mrb[0].mxu0
  %v1565 = vadd.f32 %v1481, %v1564
  %v1566 = vpop.f32.mrb[0].mxu0
  %1567 = vmatprep.mubr.f32.mxu0 0.0
  %1568 = vmatmul.mubr.f32.gmra.mrb[0].mxu0 %v1458
  %v1569 = vpop.f32.mrb[0].mxu0
  %v1570 = vadd.f32 %v1481, %v1569
  %v1571 = vpop.f32.mrb[0].mxu0
  %1572 = vmatprep.mubr.f32.mxu0 0.0
  %1573 = vmatmul.mubr.f32.gmra.mrb[0].mxu0 %v1459
  %v1574 = vpop.f32.mrb[0].mxu0
  %v1575 = vadd.f32 %v1481, %v1574
  %v1576 = vpop.f32.mrb[0].mxu0
  %1577 = vdwg.mxu0
  %v1578 = vtanh.pop %v1550
  %v1579 = vtanh.pop %v1555
  %v1580 = vtanh.pop %v1560
  %v1581 = vtanh.pop %v1565
  %v1582 = vtanh.pop %v1570
  %v1583 = vtanh.pop %v1575
  %v1584 = vsel %vm153, 1, 0
  %v1585 = vsel %vm154, 1, 0
  %v1586 = vsel %vm155, 1, 0
  %v1587 = vsel %vm156, 1, 0
  %v1588 = vsel %vm157, 1, 0
  %v1589 = vsel %vm158, 1, 0
  %vm1590 = vcmp.eq.s32.totalorder %v1584, 1
  %vm1591 = vcmp.eq.s32.totalorder %v1585, 1
  %vm1592 = vcmp.eq.s32.totalorder %v1586, 1
  %vm1593 = vcmp.eq.s32.totalorder %v1587, 1
  %vm1594 = vcmp.eq.s32.totalorder %v1588, 1
  %vm1595 = vcmp.eq.s32.totalorder %v1589, 1
  %v1596 = vsel %vm1590, 0.0, %v1578
  %v1597 = vsel %vm1591, 0.0, %v1579
  %v1598 = vsel %vm1592, 0.0, %v1580
  %v1599 = vsel %vm1593, 0.0, %v1581
  %v1600 = vsel %vm1594, 0.0, %v1582
  %v1601 = vsel %vm1595, 0.0, %v1583
  %1608 = vrot.lane.b32.xlu0 %v1596, 80
  %v1609 = vpop.permute.xlu0 %1608
  %1610 = vrot.lane.b32.xlu0 %v1597, 80
  %v1611 = vpop.permute.xlu0 %1610
  %1612 = vrot.lane.b32.xlu0 %v1598, 80
  %v1613 = vpop.permute.xlu0 %1612
  %1614 = vrot.lane.b32.xlu0 %v1599, 80
  %v1615 = vpop.permute.xlu0 %1614
  %1616 = vrot.lane.b32.xlu0 %v1600, 80
  %v1617 = vpop.permute.xlu0 %1616
  %1618 = vrot.lane.b32.xlu0 %v1601, 80
  %v1619 = vpop.permute.xlu0 %1618
  %1626 = vst.msk [vmem:[#allocation2 + $0x8] sm:$0xff] %vm274, %v1609
  %1627 = vst.msk [vmem:[#allocation2 + $0x10] sm:$0xff] %vm274, %v1611
  %1628 = vst.msk [vmem:[#allocation2 + $0x18] sm:$0xff] %vm274, %v1613
  %1629 = vst.msk [vmem:[#allocation2 + $0x20] sm:$0xff] %vm274, %v1615
  %1630 = vst.msk [vmem:[#allocation2 + $0x28] sm:$0xff] %vm274, %v1617
  %1631 = vst.msk [vmem:[#allocation2 + $0x30] sm:$0xff] %vm274, %v1619
  %v1632 = vld [vmem:[#allocation2 + $0x7] sm:$0xff]
  %v1633 = vld [vmem:[#allocation2 + $0xf] sm:$0xff]
  %v1634 = vld [vmem:[#allocation2 + $0x17] sm:$0xff]
  %v1635 = vld [vmem:[#allocation2 + $0x1f] sm:$0xff]
  %v1636 = vld [vmem:[#allocation2 + $0x27] sm:$0xff]
  %v1637 = vld [vmem:[#allocation2 + $0x2f] sm:$0xff]
  %v1638 = vsel %vm184, 0.0, %v1632
  %v1639 = vsel %vm185, 0.0, %v1633
  %v1640 = vsel %vm186, 0.0, %v1634
  %v1641 = vsel %vm187, 0.0, %v1635
  %v1642 = vsel %vm188, 0.0, %v1636
  %v1643 = vsel %vm189, 0.0, %v1637
  %1650 = vrot.lane.b32.xlu0 %v1638, 64
  %v1651 = vpop.permute.xlu0 %1650
  %1652 = vrot.lane.b32.xlu0 %v1639, 64
  %v1653 = vpop.permute.xlu0 %1652
  %1654 = vrot.lane.b32.xlu0 %v1640, 64
  %v1655 = vpop.permute.xlu0 %1654
  %1656 = vrot.lane.b32.xlu0 %v1641, 64
  %v1657 = vpop.permute.xlu0 %1656
  %1658 = vrot.lane.b32.xlu0 %v1642, 64
  %v1659 = vpop.permute.xlu0 %1658
  %1660 = vrot.lane.b32.xlu0 %v1643, 64
  %v1661 = vpop.permute.xlu0 %1660
  %v1668 = vsel %vm496, %v1596, %v1651
  %v1669 = vsel %vm496, %v1597, %v1653
  %v1670 = vsel %vm496, %v1598, %v1655
  %v1671 = vsel %vm496, %v1599, %v1657
  %v1672 = vsel %vm496, %v1600, %v1659
  %v1673 = vsel %vm496, %v1601, %v1661
  %v1674 = vld [vmem:[%s9] sm:$0xff]
  %v1675 = vld [vmem:[%s9 + $0x8] sm:$0xff]
  %v1676 = vld [vmem:[%s9 + $0x10] sm:$0xff]
  %v1677 = vld [vmem:[%s9 + $0x18] sm:$0xff]
  %v1678 = vld [vmem:[%s9 + $0x20] sm:$0xff]
  %v1679 = vld [vmem:[%s9 + $0x28] sm:$0xff]
  %v1680 = vld [vmem:[%s9 + $0x30] sm:$0xff]
  %v1681 = vld [vmem:[%s9 + $0x38] sm:$0xff]
  %v1682 = vld [vmem:[%s9 + $0x40] sm:$0xff]
  %v1683 = vld [vmem:[%s9 + $0x48] sm:$0xff]
  %v1684 = vld [vmem:[%s10] sm:$0x1]
  %v1686 = vlaneseq
  %v1687 = vshrl.u32 %v1686, 7
  %v1688 = vsub.s32 0, %v1687
  %v1689 = vrot.slane %v1684, %v1688
  %vm1691 = vcmask 654336
  %v1693 = vsel %vm1691, %v1668, 0
  %v1696 = vsel %vm1691, %v1669, 0
  %v1699 = vsel %vm1691, %v1670, 0
  %v1702 = vsel %vm1691, %v1671, 0
  %v1705 = vsel %vm1691, %v1672, 0
  %v1708 = vsel %vm1691, %v1673, 0
  %1710 = vmatprep.subr.mxu0 0.0
  %1711 = vmatpush1.msra.mxu0 %v1674
  %1712 = vmatprep.subr.mxu0 0.0
  %1713 = vmatpush1.msra.mxu0 %v1675
  %1714 = vmatprep.subr.mxu0 0.0
  %1715 = vmatpush1.msra.mxu0 %v1676
  %1716 = vmatprep.subr.mxu0 0.0
  %1717 = vmatpush1.msra.mxu0 %v1677
  %1718 = vmatprep.subr.mxu0 0.0
  %1719 = vmatpush1.msra.mxu0 %v1678
  %1720 = vmatprep.subr.mxu0 0.0
  %1721 = vmatpush1.msra.mxu0 %v1679
  %1722 = vmatprep.subr.mxu0 0.0
  %1723 = vmatpush1.msra.mxu0 %v1680
  %1724 = vmatprep.subr.mxu0 0.0
  %1725 = vmatpush1.msra.mxu0 %v1681
  %1726 = vmatprep.subr.mxu0 0.0
  %1727 = vmatpush1.msra.mxu0 %v1682
  %1728 = vmatprep.subr.mxu0 0.0
  %1729 = vmatpush1.msra.mxu0 %v1683
  %1730 = vmatprep.subr.mxu0 0.0
  %1731 = vmatpush1.msra.mxu0 0.0
  %1732 = vmatprep.subr.mxu0 0.0
  %1733 = vmatpush1.msra.mxu0 0.0
  %1734 = vmatprep.subr.mxu0 0.0
  %1735 = vmatpush1.msra.mxu0 0.0
  %1736 = vmatprep.subr.mxu0 0.0
  %1737 = vmatpush1.msra.mxu0 0.0
  %1738 = vmatprep.subr.mxu0 0.0
  %1739 = vmatpush1.msra.mxu0 0.0
  %1740 = vmatprep.subr.mxu0 0.0
  %1741 = vmatpush1.msra.mxu0 0.0
  %1742 = vmatprep.subr.mxu0 0.0
  %1743 = vmatpush1.msra.mxu0 0.0
  %1744 = vmatprep.subr.mxu0 0.0
  %1745 = vmatpush1.msra.mxu0 0.0
  %1746 = vmatprep.subr.mxu0 0.0
  %1747 = vmatpush1.msra.mxu0 0.0
  %1748 = vmatprep.subr.mxu0 0.0
  %1749 = vmatpush1.msra.mxu0 0.0
  %1750 = vmatprep.subr.mxu0 0.0
  %1751 = vmatpush1.msra.mxu0 0.0
  %1752 = vmatprep.subr.mxu0 0.0
  %1753 = vmatpush1.msra.mxu0 0.0
  %1754 = vmatprep.subr.mxu0 0.0
  %1755 = vmatpush1.msra.mxu0 0.0
  %1756 = vmatprep.subr.mxu0 0.0
  %1757 = vmatpush1.msra.mxu0 0.0
  %1758 = vmatprep.subr.mxu0 0.0
  %1759 = vmatpush1.msra.mxu0 0.0
  %1760 = vmatprep.subr.mxu0 0.0
  %1761 = vmatpush1.msra.mxu0 0.0
  %1762 = vmatprep.subr.mxu0 0.0
  %1763 = vmatpush1.msra.mxu0 0.0
  %1764 = vmatprep.subr.mxu0 0.0
  %1765 = vmatpush1.msra.mxu0 0.0
  %1766 = vmatprep.subr.mxu0 0.0
  %1767 = vmatpush1.msra.mxu0 0.0
  %1768 = vmatprep.subr.mxu0 0.0
  %1769 = vmatpush1.msra.mxu0 0.0
  %1770 = vmatprep.subr.mxu0 0.0
  %1771 = vmatpush1.msra.mxu0 0.0
  %1772 = vmatprep.subr.mxu0 0.0
  %1773 = vmatpush1.msra.mxu0 0.0
  %1774 = vmatprep.mubr.f32.mxu0 0.0
  %1775 = vmatmul.mubr.f32.gmra.mrb[0].mxu0 %v1693
  %v1776 = vpop.f32.mrb[0].mxu0
  %v1777 = vadd.f32 %v1689, %v1776
  %v1778 = vpop.f32.mrb[0].mxu0
  %1779 = vmatprep.mubr.f32.mxu0 0.0
  %1780 = vmatmul.mubr.f32.gmra.mrb[0].mxu0 %v1696
  %v1781 = vpop.f32.mrb[0].mxu0
  %v1782 = vadd.f32 %v1689, %v1781
  %v1783 = vpop.f32.mrb[0].mxu0
  %1784 = vmatprep.mubr.f32.mxu0 0.0
  %1785 = vmatmul.mubr.f32.gmra.mrb[0].mxu0 %v1699
  %v1786 = vpop.f32.mrb[0].mxu0
  %v1787 = vadd.f32 %v1689, %v1786
  %v1788 = vpop.f32.mrb[0].mxu0
  %1789 = vmatprep.mubr.f32.mxu0 0.0
  %1790 = vmatmul.mubr.f32.gmra.mrb[0].mxu0 %v1702
  %v1791 = vpop.f32.mrb[0].mxu0
  %v1792 = vadd.f32 %v1689, %v1791
  %v1793 = vpop.f32.mrb[0].mxu0
  %1794 = vmatprep.mubr.f32.mxu0 0.0
  %1795 = vmatmul.mubr.f32.gmra.mrb[0].mxu0 %v1705
  %v1796 = vpop.f32.mrb[0].mxu0
  %v1797 = vadd.f32 %v1689, %v1796
  %v1798 = vpop.f32.mrb[0].mxu0
  %1799 = vmatprep.mubr.f32.mxu0 0.0
  %1800 = vmatmul.mubr.f32.gmra.mrb[0].mxu0 %v1708
  %v1801 = vpop.f32.mrb[0].mxu0
  %v1802 = vadd.f32 %v1689, %v1801
  %v1803 = vpop.f32.mrb[0].mxu0
  %1804 = vdwg.mxu0
  %v1805 = vmul.f32 %v1777, 1.442695
  %v1806 = vpow.pop %v1805
  %v1807 = vmul.f32 %v1782, 1.442695
  %v1808 = vpow.pop %v1807
  %v1809 = vmul.f32 %v1787, 1.442695
  %v1810 = vpow.pop %v1809
  %v1811 = vmul.f32 %v1792, 1.442695
  %v1812 = vpow.pop %v1811
  %v1813 = vmul.f32 %v1797, 1.442695
  %v1814 = vpow.pop %v1813
  %v1815 = vmul.f32 %v1802, 1.442695
  %v1816 = vpow.pop %v1815
  %1817 = vst.msk [vmem:[%s11] sm:$0xff] %vm165, %v1806
  %1818 = vst.msk [vmem:[%s11 + $0x8] sm:$0xff] %vm165, %v1808
  %1819 = vst.msk [vmem:[%s11 + $0x10] sm:$0xff] %vm165, %v1810
  %1820 = vst.msk [vmem:[%s11 + $0x18] sm:$0xff] %vm165, %v1812
  %1821 = vst.msk [vmem:[%s11 + $0x20] sm:$0xff] %vm165, %v1814
  %1822 = vst.msk [vmem:[%s11 + $0x28] sm:$0xff] %vm165, %v1816
  // Predicated region
  $region46: #{decoder_forward.1} parent=0 // pred_check
    _
  $region47: #{decoder_forward.1} parent=0 // pred_check_branch
    %1824 = sbr.rel (0) target = $region49
  $region48: #{decoder_forward.1} parent=0 // pred_region
    _
  $region49: #{decoder_forward.1} parent=0 // pred_fallthru
    _
  // Predicated region
  $region50: #{decoder_forward.1} parent=0 // pred_check
    _
  $region51: #{decoder_forward.1} parent=0 // pred_check_branch
    %1826 = sbr.rel (0) target = $region53
  $region52: #{decoder_forward.1} parent=0 // pred_region
    _
  $region53: #{decoder_forward.1} parent=0 // pred_fallthru
    _

</llo_original>
